<compile_context>
chip_gen: v6e
topology: v6e:2x2x1
jax: 0.10.0
libtpu: 0.0.40
codegen_flags: <defaults>
</compile_context>

<pallas_src>
import jax
import jax.numpy as jnp
from jax.experimental import pallas as pl
from jax.experimental.pallas import tpu as pltpu


# ---------------------------------------------------------------------------
# Fully fused GCN forward kernel (ungridded, everything resident in VMEM)
# ---------------------------------------------------------------------------
def _gcn_fused_kernel(x_ref, adj_hbm_ref, w1_ref, b1_ref, w2_ref, b2_ref,
                      o_ref, adj_vmem, dma_sem):
    # Kick off the adj HBM->VMEM DMA immediately; its latency is hidden behind
    # the x @ W1 matmul below, which does not need adj.
    adj_copy = pltpu.make_async_copy(adj_hbm_ref, adj_vmem, dma_sem)
    adj_copy.start()

    # ----- Layer 1: h1 = relu(adj @ (x @ W1) + b1) -----
    s1 = jnp.dot(x_ref[...], w1_ref[...], preferred_element_type=jnp.float32)

    adj_copy.wait()
    adj = adj_vmem[...]

    h1 = jnp.dot(adj, s1, preferred_element_type=jnp.float32) + b1_ref[...]
    h1 = jnp.maximum(h1, 0.0)

    # TODO(synk): F.dropout is identity at inference (training=False); a
    # training-mode dropout mask (pltpu.prng_random_bits) is not emitted here.

    # ----- Layer 2: h2 = adj @ (h1 @ W2) + b2 -----
    s2 = jnp.dot(h1, w2_ref[...], preferred_element_type=jnp.float32)
    h2 = jnp.dot(adj, s2, preferred_element_type=jnp.float32) + b2_ref[...]

    # ----- log_softmax(dim=1) epilogue (stable: max-subtraction) -----
    m = jnp.max(h2, axis=-1, keepdims=True)
    shifted = h2 - m
    lse = jnp.log(jnp.sum(jnp.exp(shifted), axis=-1, keepdims=True))
    o_ref[...] = (shifted - lse).astype(o_ref.dtype)


def _vmem_capacity_bytes():
    """Physical VMEM per TensorCore; fall back to the tightest generation."""
    try:
        return int(pltpu.get_tpu_info().vmem_capacity_bytes)
    except Exception:
        return 64 << 20  # v7x physical VMEM per TC (smallest of v5e/v6e/v7x)


def gcn_forward(x, adj, params):
    w1, b1, w2, b2 = params
    n, f_in = x.shape
    nhid = w1.shape[1]
    nclass = w2.shape[1]
    b1_2d = b1.reshape(1, nhid)
    b2_2d = b2.reshape(1, nclass)

    # VMEM footprint of the ungridded fused kernel (no pipeline
    # double-buffering): resident inputs + adj scratch + f32 temporaries + out.
    vmem_bytes = 4 * (
        n * f_in                     # x
        + f_in * nhid + nhid         # W1, b1
        + nhid * nclass + nclass     # W2, b2
        + n * n                      # adj VMEM scratch
        + 2 * n * nhid               # s1, h1
        + 3 * n * nclass             # s2, h2, output
    )
    vmem_budget = int(vmem_bytes * 1.5) + (1 << 20)  # headroom for compiler temps
    vmem_cap = _vmem_capacity_bytes()
    assert vmem_budget <= vmem_cap, (
        "working set too large for the fused single-block kernel on this TPU "
        "generation; use the row-tiled path for this graph size")
    # Only raise the scoped VMEM limit when the footprint exceeds the smallest
    # per-generation default (16 MiB on v5e); never exceed physical capacity.
    vmem_limit = min(vmem_budget, vmem_cap) if vmem_budget > (16 << 20) else None

    flops = 2 * (n * f_in * nhid + n * n * nhid
                 + n * nhid * nclass + n * n * nclass)
    transcendentals = n * nclass + n          # exp per logit + log per row
    bytes_accessed = 4 * (n * f_in + n * n + f_in * nhid + nhid
                          + nhid * nclass + nclass + n * nclass)
    cost = pl.CostEstimate(flops=flops,
                           transcendentals=transcendentals,
                           bytes_accessed=bytes_accessed)

    vmem = pltpu.MemorySpace.VMEM
    return pl.pallas_call(
        _gcn_fused_kernel,
        out_shape=jax.ShapeDtypeStruct((n, nclass), jnp.float32),
        in_specs=[
            pl.BlockSpec(memory_space=vmem),      # x
            pl.BlockSpec(memory_space=pl.ANY),    # adj (stays in HBM; manual DMA)
            pl.BlockSpec(memory_space=vmem),      # W1
            pl.BlockSpec(memory_space=vmem),      # b1
            pl.BlockSpec(memory_space=vmem),      # W2
            pl.BlockSpec(memory_space=vmem),      # b2
        ],
        out_specs=pl.BlockSpec(memory_space=vmem),
        scratch_shapes=[
            pltpu.VMEM((n, n), jnp.float32),      # adj landing buffer
            pltpu.SemaphoreType.DMA(()),          # adj DMA completion
        ],
        compiler_params=pltpu.CompilerParams(vmem_limit_bytes=vmem_limit),
        cost_estimate=cost,
    )(x, adj, w1, b1_2d, w2, b2_2d)


# ---------------------------------------------------------------------------
# Parameter init matching GraphConvolution.reset_parameters
# ---------------------------------------------------------------------------
def init_params(key, nfeat, nhid, nclass):
    # uniform(-stdv, stdv), stdv = 1/sqrt(out_features)
    k1, k2, k3, k4 = jax.random.split(key, 4)
    stdv1 = 1.0 / jnp.sqrt(jnp.float32(nhid))
    stdv2 = 1.0 / jnp.sqrt(jnp.float32(nclass))
    w1 = jax.random.uniform(k1, (nfeat, nhid), jnp.float32, -stdv1, stdv1)
    b1 = jax.random.uniform(k2, (nhid,), jnp.float32, -stdv1, stdv1)
    w2 = jax.random.uniform(k3, (nhid, nclass), jnp.float32, -stdv2, stdv2)
    b2 = jax.random.uniform(k4, (nclass,), jnp.float32, -stdv2, stdv2)
    return (w1, b1, w2, b2)


if __name__ == "__main__":
    key = jax.random.PRNGKey(0)
    N, NFEAT, NHID, NCLASS = 256, 64, 32, 16

    kx, ka, kp = jax.random.split(key, 3)
    x = jax.random.normal(kx, (N, NFEAT), jnp.float32)

    # Symmetric, row-normalized dense adjacency with self-loops.
    a = (jax.random.uniform(ka, (N, N), jnp.float32) < 0.05).astype(jnp.float32)
    a = jnp.maximum(a, a.T) + jnp.eye(N, dtype=jnp.float32)
    adj = a / jnp.sum(a, axis=1, keepdims=True)

    params = init_params(kp, NFEAT, NHID, NCLASS)

    out = gcn_forward(x, adj, params)
    jax.block_until_ready(out)

    # Pure-JAX reference check (strict tolerance, f32 everywhere).
    w1, b1, w2, b2 = params
    h1 = jnp.maximum(adj @ (x @ w1) + b1, 0.0)
    h2 = adj @ (h1 @ w2) + b2
    ref = jax.nn.log_softmax(h2, axis=1)
    assert jnp.allclose(out, ref, atol=1e-4, rtol=1e-4)

    print("KERNEL_OK")
</pallas_src>

<mosaic_0001>
module attributes {stable_mosaic.version = 11 : i64} {
  func.func @_gcn_fused_kernel(%arg0: memref<256x64xf32, #tpu.memory_space<vmem>>, %arg1: memref<256x256xf32, #tpu.memory_space<any>>, %arg2: memref<64x32xf32, #tpu.memory_space<vmem>>, %arg3: memref<1x32xf32, #tpu.memory_space<vmem>>, %arg4: memref<32x16xf32, #tpu.memory_space<vmem>>, %arg5: memref<1x16xf32, #tpu.memory_space<vmem>>, %arg6: memref<256x16xf32, #tpu.memory_space<vmem>>, %arg7: memref<256x256xf32, #tpu.memory_space<vmem>>, %arg8: memref<!tpu.dma_semaphore, #tpu.memory_space<semaphore_mem>>) attributes {dimension_semantics = [], scalar_prefetch = 0 : i64, scratch_operands = 2 : i64, tpu.core_type = #tpu.core_type<tc>} {
    tpu.enqueue_dma source(%arg1 : memref<256x256xf32, #tpu.memory_space<any>>) target(%arg7 : memref<256x256xf32, #tpu.memory_space<vmem>>) target_semaphore(%arg8 : memref<!tpu.dma_semaphore, #tpu.memory_space<semaphore_mem>>)
    %c0 = arith.constant 0 : index
    %c0_0 = arith.constant 0 : index
    %0 = vector.load %arg0[%c0, %c0_0] : memref<256x64xf32, #tpu.memory_space<vmem>>, vector<256x64xf32>
    %c0_1 = arith.constant 0 : index
    %c0_2 = arith.constant 0 : index
    %1 = vector.load %arg2[%c0_1, %c0_2] : memref<64x32xf32, #tpu.memory_space<vmem>>, vector<64x32xf32>
    %cst = arith.constant dense<0.000000e+00> : vector<256x32xf32>
    %2 = tpu.matmul %0, %1, %cst {dimension_numbers = #tpu.dot_dimension_numbers<[1], [0], [0], [1], [0, 0, 1, 1], [], []>} : vector<256x64xf32>, vector<64x32xf32>, vector<256x32xf32> -> vector<256x32xf32>
    tpu.wait_dma2 semaphore(%arg8 : memref<!tpu.dma_semaphore, #tpu.memory_space<semaphore_mem>>) src(%arg1 : memref<256x256xf32, #tpu.memory_space<any>>) dst(%arg7 : memref<256x256xf32, #tpu.memory_space<vmem>>)
    %c0_3 = arith.constant 0 : index
    %c0_4 = arith.constant 0 : index
    %3 = vector.load %arg7[%c0_3, %c0_4] : memref<256x256xf32, #tpu.memory_space<vmem>>, vector<256x256xf32>
    %cst_5 = arith.constant dense<0.000000e+00> : vector<256x32xf32>
    %4 = tpu.matmul %3, %2, %cst_5 {dimension_numbers = #tpu.dot_dimension_numbers<[1], [0], [0], [1], [0, 0, 1, 1], [], []>} : vector<256x256xf32>, vector<256x32xf32>, vector<256x32xf32> -> vector<256x32xf32>
    %c0_6 = arith.constant 0 : index
    %c0_7 = arith.constant 0 : index
    %5 = vector.load %arg3[%c0_6, %c0_7] : memref<1x32xf32, #tpu.memory_space<vmem>>, vector<1x32xf32>
    %6 = vector.broadcast %5 : vector<1x32xf32> to vector<256x32xf32>
    %7 = arith.addf %4, %6 : vector<256x32xf32>
    %cst_8 = arith.constant 0.000000e+00 : f32
    %8 = vector.broadcast %cst_8 : f32 to vector<256x32xf32>
    %9 = arith.maximumf %7, %8 : vector<256x32xf32>
    %c0_9 = arith.constant 0 : index
    %c0_10 = arith.constant 0 : index
    %10 = vector.load %arg4[%c0_9, %c0_10] : memref<32x16xf32, #tpu.memory_space<vmem>>, vector<32x16xf32>
    %cst_11 = arith.constant dense<0.000000e+00> : vector<256x16xf32>
    %11 = tpu.matmul %9, %10, %cst_11 {dimension_numbers = #tpu.dot_dimension_numbers<[1], [0], [0], [1], [0, 0, 1, 1], [], []>} : vector<256x32xf32>, vector<32x16xf32>, vector<256x16xf32> -> vector<256x16xf32>
    %cst_12 = arith.constant dense<0.000000e+00> : vector<256x16xf32>
    %12 = tpu.matmul %3, %11, %cst_12 {dimension_numbers = #tpu.dot_dimension_numbers<[1], [0], [0], [1], [0, 0, 1, 1], [], []>} : vector<256x256xf32>, vector<256x16xf32>, vector<256x16xf32> -> vector<256x16xf32>
    %c0_13 = arith.constant 0 : index
    %c0_14 = arith.constant 0 : index
    %13 = vector.load %arg5[%c0_13, %c0_14] : memref<1x16xf32, #tpu.memory_space<vmem>>, vector<1x16xf32>
    %14 = vector.broadcast %13 : vector<1x16xf32> to vector<256x16xf32>
    %15 = arith.addf %12, %14 : vector<256x16xf32>
    %cst_15 = arith.constant dense<0xFF800000> : vector<256xf32>
    %16 = vector.multi_reduction <maximumf>, %15, %cst_15 [1] : vector<256x16xf32> to vector<256xf32>
    %17 = vector.shape_cast %16 : vector<256xf32> to vector<256x1xf32>
    %18 = vector.broadcast %17 : vector<256x1xf32> to vector<256x16xf32>
    %19 = arith.subf %15, %18 : vector<256x16xf32>
    %20 = math.exp %19 : vector<256x16xf32>
    %cst_16 = arith.constant dense<0.000000e+00> : vector<256xf32>
    %21 = vector.multi_reduction <add>, %20, %cst_16 [1] : vector<256x16xf32> to vector<256xf32>
    %22 = vector.shape_cast %21 : vector<256xf32> to vector<256x1xf32>
    %23 = math.log %22 : vector<256x1xf32>
    %24 = vector.broadcast %23 : vector<256x1xf32> to vector<256x16xf32>
    %25 = arith.subf %19, %24 : vector<256x16xf32>
    %c0_17 = arith.constant 0 : index
    %c0_18 = arith.constant 0 : index
    %26 = vector.load %arg6[%c0_17, %c0_18] : memref<256x16xf32, #tpu.memory_space<vmem>>, vector<256x16xf32>
    tpu.vector_store %arg6[%c0_17, %c0_18], %25 {strides = array<i32>} : memref<256x16xf32, #tpu.memory_space<vmem>>, vector<256x16xf32>,
    return
  }
}

</mosaic_0001>

<llo_original>
// kernel: tpu_custom_call.1
$region0: #{tpu_custom_call.1}
  #allocation0 [shape = 'u32[]', space=smem, size = 0x4, offset = 0x4, fixed_abs, tag = 'smem constant byte address 0x4 - core index']
  #allocation1 [shape = 'u32[144,128]{1,0:T(1,128)}', space=vmem, size = 0x12000, scoped, tag = 'internal scratch']
  #allocation2 [shape = 'f32[256,256]{1,0:T(8,128)}', space=vmem, size = 0x40000, scoped, tag = 'scratch operand']
  #allocation3 [shape = 's32[1]{0}', space=sflag, size = 0x4, scoped, tag = 'scratch operand']
  #allocation4 [shape = 's32[]', space=sflag, size = 0x4, offset = 0, fixed_abs, tag = 'sflag constant byte address 0x0 - dummy sync flag']
  %s0 = inlined_call_operand.vmem [shape: f32[256,64], index: 0, kind: input, shape index: {}]
  %s1 = inlined_call_operand.vmem [shape: f32[256,256], index: 1, kind: input, shape index: {}]
  %s2 = inlined_call_operand.vmem [shape: f32[64,32], index: 2, kind: input, shape index: {}]
  %s3 = inlined_call_operand.vmem [shape: f32[1,32], index: 3, kind: input, shape index: {}]
  %s4 = inlined_call_operand.vmem [shape: f32[32,16], index: 4, kind: input, shape index: {}]
  %s5 = inlined_call_operand.vmem [shape: f32[1,16], index: 5, kind: input, shape index: {}]
  %s6 = inlined_call_operand.vmem [shape: f32[256,16], index: 6, kind: output, shape index: {}]
  %s7 = sld [smem:[#allocation0]]
  $region64: #{tpu_custom_call.1} parent=0
    _
  %s9 = ssub.s32 1, %s7
  %s10 = scalar_select 0, %s9, %s7
  // Predicated region
  $region2: #{tpu_custom_call.1} parent=0 // pred_check
    _
  $region3: #{tpu_custom_call.1} parent=0 // pred_check_branch
    %12 = sbr.rel (0) target = $region5
  $region4: #{tpu_custom_call.1} parent=0 // pred_region
    _
  $region5: #{tpu_custom_call.1} parent=0 // pred_fallthru
    _
  // Predicated region
  $region6: #{tpu_custom_call.1} parent=0 // pred_check
    _
  $region7: #{tpu_custom_call.1} parent=0 // pred_check_branch
    %14 = sbr.rel (0) target = $region9
  $region8: #{tpu_custom_call.1} parent=0 // pred_region
    _
  $region9: #{tpu_custom_call.1} parent=0 // pred_fallthru
    _
  // Predicated region
  $region10: #{tpu_custom_call.1} parent=0 // pred_check
    _
  $region11: #{tpu_custom_call.1} parent=0 // pred_check_branch
    %16 = sbr.rel (0) target = $region13
  $region12: #{tpu_custom_call.1} parent=0 // pred_region
    _
  $region13: #{tpu_custom_call.1} parent=0 // pred_fallthru
    _
  // Predicated region
  $region14: #{tpu_custom_call.1} parent=0 // pred_check
    _
  $region15: #{tpu_custom_call.1} parent=0 // pred_check_branch
    %18 = sbr.rel (0) target = $region17
  $region16: #{tpu_custom_call.1} parent=0 // pred_region
    _
  $region17: #{tpu_custom_call.1} parent=0 // pred_fallthru
    _
  // Predicated region
  $region18: #{tpu_custom_call.1} parent=0 // pred_check
    _
  $region19: #{tpu_custom_call.1} parent=0 // pred_check_branch
    %20 = sbr.rel (0) target = $region21
  $region20: #{tpu_custom_call.1} parent=0 // pred_region
    _
  $region21: #{tpu_custom_call.1} parent=0 // pred_fallthru
    _
  %p22 = scmp.lt.u32.totalorder 512, 8
  %p23 = pneg %p22
  // Predicated region
  $region22: #{tpu_custom_call.1} parent=0 // pred_check
    _
  $region23: #{tpu_custom_call.1} parent=0 // pred_check_branch
    %25 = sbr.rel (%p22) target = $region25
  $region24: #{tpu_custom_call.1} parent=0 // pred_region
    %s41 = sand.u32 512, 7
    %p42 = scmp.eq.s32.totalorder %s41, 0
    // Predicated region
    $region37: #{tpu_custom_call.1} parent=24 // pred_check
      %p43 = pneg %p42
    $region38: #{tpu_custom_call.1} parent=24 // pred_check_branch
      %45 = sbr.rel (%p43) target = $region40
    $region39: #{tpu_custom_call.1} parent=24 // pred_region
      loop: start=0, step=1, limit=1
      $region41: #{tpu_custom_call.1} parent=39 // loop_pre_header
        _
      $region42: #{tpu_custom_call.1} parent=39 // loop_header
        %s47 = sphi 0, %s51
        %p48 = scmp.ge.s32.totalorder %s47, 1
        %s52 = sphi %s1, %s1
        %s53 = sphi [#allocation2], [#allocation2]
      $region43: #{tpu_custom_call.1} parent=39 // loop_header_branch
        %50 = sbr.rel (%p48) target = $region47
      $region44: #{tpu_custom_call.1} parent=39 // loop_body
        %v54 = vld [vmem:[%s52] sm:$0xff]
        %55 = vst [vmem:[%s53] sm:$0xff] %v54
        %v56 = vld [vmem:[%s52 + $0x8] sm:$0xff]
        %57 = vst [vmem:[%s53 + $0x8] sm:$0xff] %v56
        %v58 = vld [vmem:[%s52 + $0x10] sm:$0xff]
        %59 = vst [vmem:[%s53 + $0x10] sm:$0xff] %v58
        %v60 = vld [vmem:[%s52 + $0x18] sm:$0xff]
        %61 = vst [vmem:[%s53 + $0x18] sm:$0xff] %v60
        %v62 = vld [vmem:[%s52 + $0x20] sm:$0xff]
        %63 = vst [vmem:[%s53 + $0x20] sm:$0xff] %v62
        %v64 = vld [vmem:[%s52 + $0x28] sm:$0xff]
        %65 = vst [vmem:[%s53 + $0x28] sm:$0xff] %v64
        %v66 = vld [vmem:[%s52 + $0x30] sm:$0xff]
        %67 = vst [vmem:[%s53 + $0x30] sm:$0xff] %v66
        %v68 = vld [vmem:[%s52 + $0x38] sm:$0xff]
        %69 = vst [vmem:[%s53 + $0x38] sm:$0xff] %v68
        %v70 = vld [vmem:[%s52 + $0x40] sm:$0xff]
        %71 = vst [vmem:[%s53 + $0x40] sm:$0xff] %v70
        %v72 = vld [vmem:[%s52 + $0x48] sm:$0xff]
        %73 = vst [vmem:[%s53 + $0x48] sm:$0xff] %v72
        %v74 = vld [vmem:[%s52 + $0x50] sm:$0xff]
        %75 = vst [vmem:[%s53 + $0x50] sm:$0xff] %v74
        %v76 = vld [vmem:[%s52 + $0x58] sm:$0xff]
        %77 = vst [vmem:[%s53 + $0x58] sm:$0xff] %v76
        %v78 = vld [vmem:[%s52 + $0x60] sm:$0xff]
        %79 = vst [vmem:[%s53 + $0x60] sm:$0xff] %v78
        %v80 = vld [vmem:[%s52 + $0x68] sm:$0xff]
        %81 = vst [vmem:[%s53 + $0x68] sm:$0xff] %v80
        %v82 = vld [vmem:[%s52 + $0x70] sm:$0xff]
        %83 = vst [vmem:[%s53 + $0x70] sm:$0xff] %v82
        %v84 = vld [vmem:[%s52 + $0x78] sm:$0xff]
        %85 = vst [vmem:[%s53 + $0x78] sm:$0xff] %v84
        %v86 = vld [vmem:[%s52 + $0x80] sm:$0xff]
        %87 = vst [vmem:[%s53 + $0x80] sm:$0xff] %v86
        %v88 = vld [vmem:[%s52 + $0x88] sm:$0xff]
        %89 = vst [vmem:[%s53 + $0x88] sm:$0xff] %v88
        %v90 = vld [vmem:[%s52 + $0x90] sm:$0xff]
        %91 = vst [vmem:[%s53 + $0x90] sm:$0xff] %v90
        %v92 = vld [vmem:[%s52 + $0x98] sm:$0xff]
        %93 = vst [vmem:[%s53 + $0x98] sm:$0xff] %v92
        %v94 = vld [vmem:[%s52 + $0xa0] sm:$0xff]
        %95 = vst [vmem:[%s53 + $0xa0] sm:$0xff] %v94
        %v96 = vld [vmem:[%s52 + $0xa8] sm:$0xff]
        %97 = vst [vmem:[%s53 + $0xa8] sm:$0xff] %v96
        %v98 = vld [vmem:[%s52 + $0xb0] sm:$0xff]
        %99 = vst [vmem:[%s53 + $0xb0] sm:$0xff] %v98
        %v100 = vld [vmem:[%s52 + $0xb8] sm:$0xff]
        %101 = vst [vmem:[%s53 + $0xb8] sm:$0xff] %v100
        %v102 = vld [vmem:[%s52 + $0xc0] sm:$0xff]
        %103 = vst [vmem:[%s53 + $0xc0] sm:$0xff] %v102
        %v104 = vld [vmem:[%s52 + $0xc8] sm:$0xff]
        %105 = vst [vmem:[%s53 + $0xc8] sm:$0xff] %v104
        %v106 = vld [vmem:[%s52 + $0xd0] sm:$0xff]
        %107 = vst [vmem:[%s53 + $0xd0] sm:$0xff] %v106
        %v108 = vld [vmem:[%s52 + $0xd8] sm:$0xff]
        %109 = vst [vmem:[%s53 + $0xd8] sm:$0xff] %v108
        %v110 = vld [vmem:[%s52 + $0xe0] sm:$0xff]
        %111 = vst [vmem:[%s53 + $0xe0] sm:$0xff] %v110
        %v112 = vld [vmem:[%s52 + $0xe8] sm:$0xff]
        %113 = vst [vmem:[%s53 + $0xe8] sm:$0xff] %v112
        %v114 = vld [vmem:[%s52 + $0xf0] sm:$0xff]
        %115 = vst [vmem:[%s53 + $0xf0] sm:$0xff] %v114
        %v116 = vld [vmem:[%s52 + $0xf8] sm:$0xff]
        %117 = vst [vmem:[%s53 + $0xf8] sm:$0xff] %v116
        %v118 = vld [vmem:[%s52 + $0x100] sm:$0xff]
        %119 = vst [vmem:[%s53 + $0x100] sm:$0xff] %v118
        %v120 = vld [vmem:[%s52 + $0x108] sm:$0xff]
        %121 = vst [vmem:[%s53 + $0x108] sm:$0xff] %v120
        %v122 = vld [vmem:[%s52 + $0x110] sm:$0xff]
        %123 = vst [vmem:[%s53 + $0x110] sm:$0xff] %v122
        %v124 = vld [vmem:[%s52 + $0x118] sm:$0xff]
        %125 = vst [vmem:[%s53 + $0x118] sm:$0xff] %v124
        %v126 = vld [vmem:[%s52 + $0x120] sm:$0xff]
        %127 = vst [vmem:[%s53 + $0x120] sm:$0xff] %v126
        %v128 = vld [vmem:[%s52 + $0x128] sm:$0xff]
        %129 = vst [vmem:[%s53 + $0x128] sm:$0xff] %v128
        %v130 = vld [vmem:[%s52 + $0x130] sm:$0xff]
        %131 = vst [vmem:[%s53 + $0x130] sm:$0xff] %v130
        %v132 = vld [vmem:[%s52 + $0x138] sm:$0xff]
        %133 = vst [vmem:[%s53 + $0x138] sm:$0xff] %v132
        %v134 = vld [vmem:[%s52 + $0x140] sm:$0xff]
        %135 = vst [vmem:[%s53 + $0x140] sm:$0xff] %v134
        %v136 = vld [vmem:[%s52 + $0x148] sm:$0xff]
        %137 = vst [vmem:[%s53 + $0x148] sm:$0xff] %v136
        %v138 = vld [vmem:[%s52 + $0x150] sm:$0xff]
        %139 = vst [vmem:[%s53 + $0x150] sm:$0xff] %v138
        %v140 = vld [vmem:[%s52 + $0x158] sm:$0xff]
        %141 = vst [vmem:[%s53 + $0x158] sm:$0xff] %v140
        %v142 = vld [vmem:[%s52 + $0x160] sm:$0xff]
        %143 = vst [vmem:[%s53 + $0x160] sm:$0xff] %v142
        %v144 = vld [vmem:[%s52 + $0x168] sm:$0xff]
        %145 = vst [vmem:[%s53 + $0x168] sm:$0xff] %v144
        %v146 = vld [vmem:[%s52 + $0x170] sm:$0xff]
        %147 = vst [vmem:[%s53 + $0x170] sm:$0xff] %v146
        %v148 = vld [vmem:[%s52 + $0x178] sm:$0xff]
        %149 = vst [vmem:[%s53 + $0x178] sm:$0xff] %v148
        %v150 = vld [vmem:[%s52 + $0x180] sm:$0xff]
        %151 = vst [vmem:[%s53 + $0x180] sm:$0xff] %v150
        %v152 = vld [vmem:[%s52 + $0x188] sm:$0xff]
        %153 = vst [vmem:[%s53 + $0x188] sm:$0xff] %v152
        %v154 = vld [vmem:[%s52 + $0x190] sm:$0xff]
        %155 = vst [vmem:[%s53 + $0x190] sm:$0xff] %v154
        %v156 = vld [vmem:[%s52 + $0x198] sm:$0xff]
        %157 = vst [vmem:[%s53 + $0x198] sm:$0xff] %v156
        %v158 = vld [vmem:[%s52 + $0x1a0] sm:$0xff]
        %159 = vst [vmem:[%s53 + $0x1a0] sm:$0xff] %v158
        %v160 = vld [vmem:[%s52 + $0x1a8] sm:$0xff]
        %161 = vst [vmem:[%s53 + $0x1a8] sm:$0xff] %v160
        %v162 = vld [vmem:[%s52 + $0x1b0] sm:$0xff]
        %163 = vst [vmem:[%s53 + $0x1b0] sm:$0xff] %v162
        %v164 = vld [vmem:[%s52 + $0x1b8] sm:$0xff]
        %165 = vst [vmem:[%s53 + $0x1b8] sm:$0xff] %v164
        %v166 = vld [vmem:[%s52 + $0x1c0] sm:$0xff]
        %167 = vst [vmem:[%s53 + $0x1c0] sm:$0xff] %v166
        %v168 = vld [vmem:[%s52 + $0x1c8] sm:$0xff]
        %169 = vst [vmem:[%s53 + $0x1c8] sm:$0xff] %v168
        %v170 = vld [vmem:[%s52 + $0x1d0] sm:$0xff]
        %171 = vst [vmem:[%s53 + $0x1d0] sm:$0xff] %v170
        %v172 = vld [vmem:[%s52 + $0x1d8] sm:$0xff]
        %173 = vst [vmem:[%s53 + $0x1d8] sm:$0xff] %v172
        %v174 = vld [vmem:[%s52 + $0x1e0] sm:$0xff]
        %175 = vst [vmem:[%s53 + $0x1e0] sm:$0xff] %v174
        %v176 = vld [vmem:[%s52 + $0x1e8] sm:$0xff]
        %177 = vst [vmem:[%s53 + $0x1e8] sm:$0xff] %v176
        %v178 = vld [vmem:[%s52 + $0x1f0] sm:$0xff]
        %179 = vst [vmem:[%s53 + $0x1f0] sm:$0xff] %v178
        %v180 = vld [vmem:[%s52 + $0x1f8] sm:$0xff]
        %181 = vst [vmem:[%s53 + $0x1f8] sm:$0xff] %v180
      $region45: #{tpu_custom_call.1} parent=39 // loop_footer
        %s51 = sadd.s32 1, %s47
      $region46: #{tpu_custom_call.1} parent=39 // loop_footer_branch
        %46 = sbr.rel target = $region42
      $region47: #{tpu_custom_call.1} parent=39 // loop_exit
        _
    $region40: #{tpu_custom_call.1} parent=24 // pred_fallthru
      _
    %p182 = pneg %p42
    // Predicated region
    $region48: #{tpu_custom_call.1} parent=24 // pred_check
      _
    $region49: #{tpu_custom_call.1} parent=24 // pred_check_branch
      %184 = sbr.rel (%p42) target = $region51
    $region50: #{tpu_custom_call.1} parent=24 // pred_region
      %s185 = sand.u32 512, 7
    $region51: #{tpu_custom_call.1} parent=24 // pred_fallthru
      _
  $region25: #{tpu_custom_call.1} parent=0 // pred_fallthru
    _
  // Predicated region
  $region26: #{tpu_custom_call.1} parent=0 // pred_check
    %p26 = pneg %p22
  $region27: #{tpu_custom_call.1} parent=0 // pred_check_branch
    %28 = sbr.rel (%p26) target = $region29
  $region28: #{tpu_custom_call.1} parent=0 // pred_region
    %s29 = sshll.u32 1, 512
    %s30 = ssub.s32 %s29, 1
    loop: start=0, step=1, limit=1
    $region30: #{tpu_custom_call.1} parent=28 // loop_pre_header
      _
    $region31: #{tpu_custom_call.1} parent=28 // loop_header
      %s32 = sphi 0, %s36
      %p33 = scmp.ge.s32.totalorder %s32, 1
      %s37 = sphi %s1, %s1
      %s38 = sphi [#allocation2], [#allocation2]
    $region32: #{tpu_custom_call.1} parent=28 // loop_header_branch
      %35 = sbr.rel (%p33) target = $region36
    $region33: #{tpu_custom_call.1} parent=28 // loop_body
      %v39 = vld [vmem:[%s37] sm:%s30]
      %40 = vst [vmem:[%s38] sm:%s30] %v39
    $region34: #{tpu_custom_call.1} parent=28 // loop_footer
      %s36 = sadd.s32 1, %s32
    $region35: #{tpu_custom_call.1} parent=28 // loop_footer_branch
      %31 = sbr.rel target = $region31
    $region36: #{tpu_custom_call.1} parent=28 // loop_exit
      _
  $region29: #{tpu_custom_call.1} parent=0 // pred_fallthru
    _
  // Predicated region
  $region52: #{tpu_custom_call.1} parent=0 // pred_check
    _
  $region53: #{tpu_custom_call.1} parent=0 // pred_check_branch
    %188 = sbr.rel (0) target = $region55
  $region54: #{tpu_custom_call.1} parent=0 // pred_region
    %189 = vsyncadd [#allocation3], 8192
  $region55: #{tpu_custom_call.1} parent=0 // pred_fallthru
    _
  %v190 = vld [vmem:[%s0] sm:$0xff]
  %v191 = vld [vmem:[%s0 + $0x8] sm:$0xff]
  %v192 = vld [vmem:[%s0 + $0x10] sm:$0xff]
  %v193 = vld [vmem:[%s0 + $0x18] sm:$0xff]
  %v194 = vld [vmem:[%s0 + $0x20] sm:$0xff]
  %v195 = vld [vmem:[%s0 + $0x28] sm:$0xff]
  %v196 = vld [vmem:[%s0 + $0x30] sm:$0xff]
  %v197 = vld [vmem:[%s0 + $0x38] sm:$0xff]
  %v198 = vld [vmem:[%s0 + $0x40] sm:$0xff]
  %v199 = vld [vmem:[%s0 + $0x48] sm:$0xff]
  %v200 = vld [vmem:[%s0 + $0x50] sm:$0xff]
  %v201 = vld [vmem:[%s0 + $0x58] sm:$0xff]
  %v202 = vld [vmem:[%s0 + $0x60] sm:$0xff]
  %v203 = vld [vmem:[%s0 + $0x68] sm:$0xff]
  %v204 = vld [vmem:[%s0 + $0x70] sm:$0xff]
  %v205 = vld [vmem:[%s0 + $0x78] sm:$0xff]
  %v206 = vld [vmem:[%s0 + $0x80] sm:$0xff]
  %v207 = vld [vmem:[%s0 + $0x88] sm:$0xff]
  %v208 = vld [vmem:[%s0 + $0x90] sm:$0xff]
  %v209 = vld [vmem:[%s0 + $0x98] sm:$0xff]
  %v210 = vld [vmem:[%s0 + $0xa0] sm:$0xff]
  %v211 = vld [vmem:[%s0 + $0xa8] sm:$0xff]
  %v212 = vld [vmem:[%s0 + $0xb0] sm:$0xff]
  %v213 = vld [vmem:[%s0 + $0xb8] sm:$0xff]
  %v214 = vld [vmem:[%s0 + $0xc0] sm:$0xff]
  %v215 = vld [vmem:[%s0 + $0xc8] sm:$0xff]
  %v216 = vld [vmem:[%s0 + $0xd0] sm:$0xff]
  %v217 = vld [vmem:[%s0 + $0xd8] sm:$0xff]
  %v218 = vld [vmem:[%s0 + $0xe0] sm:$0xff]
  %v219 = vld [vmem:[%s0 + $0xe8] sm:$0xff]
  %v220 = vld [vmem:[%s0 + $0xf0] sm:$0xff]
  %v221 = vld [vmem:[%s0 + $0xf8] sm:$0xff]
  %v222 = vld [vmem:[%s2] sm:$0xff]
  %v223 = vld [vmem:[%s2 + $0x8] sm:$0xff]
  %v224 = vld [vmem:[%s2 + $0x10] sm:$0xff]
  %v225 = vld [vmem:[%s2 + $0x18] sm:$0xff]
  %v226 = vld [vmem:[%s2 + $0x20] sm:$0xff]
  %v227 = vld [vmem:[%s2 + $0x28] sm:$0xff]
  %v228 = vld [vmem:[%s2 + $0x30] sm:$0xff]
  %v229 = vld [vmem:[%s2 + $0x38] sm:$0xff]
  %vm230 = vcmask 523264
  %v232 = vsel %vm230, %v190, 0
  %v235 = vsel %vm230, %v191, 0
  %v238 = vsel %vm230, %v192, 0
  %v241 = vsel %vm230, %v193, 0
  %v244 = vsel %vm230, %v194, 0
  %v247 = vsel %vm230, %v195, 0
  %v250 = vsel %vm230, %v196, 0
  %v253 = vsel %vm230, %v197, 0
  %v256 = vsel %vm230, %v198, 0
  %v259 = vsel %vm230, %v199, 0
  %v262 = vsel %vm230, %v200, 0
  %v265 = vsel %vm230, %v201, 0
  %v268 = vsel %vm230, %v202, 0
  %v271 = vsel %vm230, %v203, 0
  %v274 = vsel %vm230, %v204, 0
  %v277 = vsel %vm230, %v205, 0
  %v280 = vsel %vm230, %v206, 0
  %v283 = vsel %vm230, %v207, 0
  %v286 = vsel %vm230, %v208, 0
  %v289 = vsel %vm230, %v209, 0
  %v292 = vsel %vm230, %v210, 0
  %v295 = vsel %vm230, %v211, 0
  %v298 = vsel %vm230, %v212, 0
  %v301 = vsel %vm230, %v213, 0
  %v304 = vsel %vm230, %v214, 0
  %v307 = vsel %vm230, %v215, 0
  %v310 = vsel %vm230, %v216, 0
  %v313 = vsel %vm230, %v217, 0
  %v316 = vsel %vm230, %v218, 0
  %v319 = vsel %vm230, %v219, 0
  %v322 = vsel %vm230, %v220, 0
  %v325 = vsel %vm230, %v221, 0
  %327 = vmatprep.subr.mxu0 0.0
  %328 = vmatpush1.msra.mxu0 0.0
  %329 = vmatprep.subr.mxu0 0.0
  %330 = vmatpush1.msra.mxu0 0.0
  %331 = vmatprep.subr.mxu0 0.0
  %332 = vmatpush1.msra.mxu0 0.0
  %333 = vmatprep.subr.mxu0 0.0
  %334 = vmatpush1.msra.mxu0 0.0
  %335 = vmatprep.subr.mxu0 0.0
  %336 = vmatpush1.msra.mxu0 0.0
  %337 = vmatprep.subr.mxu0 0.0
  %338 = vmatpush1.msra.mxu0 0.0
  %339 = vmatprep.subr.mxu0 0.0
  %340 = vmatpush1.msra.mxu0 0.0
  %341 = vmatprep.subr.mxu0 0.0
  %342 = vmatpush1.msra.mxu0 0.0
  %343 = vmatprep.subr.mxu0 0.0
  %344 = vmatpush1.msra.mxu0 %v229
  %345 = vmatprep.subr.mxu0 0.0
  %346 = vmatpush1.msra.mxu0 %v228
  %347 = vmatprep.subr.mxu0 0.0
  %348 = vmatpush1.msra.mxu0 %v227
  %349 = vmatprep.subr.mxu0 0.0
  %350 = vmatpush1.msra.mxu0 %v226
  %351 = vmatprep.subr.mxu0 0.0
  %352 = vmatpush1.msra.mxu0 %v225
  %353 = vmatprep.subr.mxu0 0.0
  %354 = vmatpush1.msra.mxu0 %v224
  %355 = vmatprep.subr.mxu0 0.0
  %356 = vmatpush1.msra.mxu0 %v223
  %357 = vmatprep.subr.mxu0 0.0
  %358 = vmatpush1.msra.mxu0 %v222
  %359 = vmatprep.subr.mxu0 0.0
  %360 = vmatpush2.msra.mxu0 0.0
  %361 = vmatprep.subr.mxu0 0.0
  %362 = vmatpush2.msra.mxu0 0.0
  %363 = vmatprep.subr.mxu0 0.0
  %364 = vmatpush2.msra.mxu0 0.0
  %365 = vmatprep.subr.mxu0 0.0
  %366 = vmatpush2.msra.mxu0 0.0
  %367 = vmatprep.subr.mxu0 0.0
  %368 = vmatpush2.msra.mxu0 0.0
  %369 = vmatprep.subr.mxu0 0.0
  %370 = vmatpush2.msra.mxu0 0.0
  %371 = vmatprep.subr.mxu0 0.0
  %372 = vmatpush2.msra.mxu0 0.0
  %373 = vmatprep.subr.mxu0 0.0
  %374 = vmatpush2.msra.mxu0 0.0
  %375 = vmatprep.subr.mxu0 0.0
  %376 = vmatpush2.msra.mxu0 0.0
  %377 = vmatprep.subr.mxu0 0.0
  %378 = vmatpush2.msra.mxu0 0.0
  %379 = vmatprep.subr.mxu0 0.0
  %380 = vmatpush2.msra.mxu0 0.0
  %381 = vmatprep.subr.mxu0 0.0
  %382 = vmatpush2.msra.mxu0 0.0
  %383 = vmatprep.subr.mxu0 0.0
  %384 = vmatpush2.msra.mxu0 0.0
  %385 = vmatprep.subr.mxu0 0.0
  %386 = vmatpush2.msra.mxu0 0.0
  %387 = vmatprep.subr.mxu0 0.0
  %388 = vmatpush2.msra.mxu0 0.0
  %389 = vmatprep.subr.mxu0 0.0
  %390 = vmatpush2.msra.mxu0 0.0
  %391 = vmatprep.mubr.f32.mxu0 0.0
  %392 = vmatmul.mubr.f32.gmra.mxu0 %v232
  %v393 = vpop.f32.mrf.mxu0
  %v394 = vadd.f32 0.0, %v393
  %v395 = vpop.f32.mrf.mxu0
  %396 = vmatprep.mubr.f32.mxu0 0.0
  %397 = vmatmul.mubr.f32.gmra.mxu0 %v235
  %v398 = vpop.f32.mrf.mxu0
  %v399 = vadd.f32 0.0, %v398
  %v400 = vpop.f32.mrf.mxu0
  %401 = vmatprep.mubr.f32.mxu0 0.0
  %402 = vmatmul.mubr.f32.gmra.mxu0 %v238
  %v403 = vpop.f32.mrf.mxu0
  %v404 = vadd.f32 0.0, %v403
  %v405 = vpop.f32.mrf.mxu0
  %406 = vmatprep.mubr.f32.mxu0 0.0
  %407 = vmatmul.mubr.f32.gmra.mxu0 %v241
  %v408 = vpop.f32.mrf.mxu0
  %v409 = vadd.f32 0.0, %v408
  %v410 = vpop.f32.mrf.mxu0
  %411 = vmatprep.mubr.f32.mxu0 0.0
  %412 = vmatmul.mubr.f32.gmra.mxu0 %v244
  %v413 = vpop.f32.mrf.mxu0
  %v414 = vadd.f32 0.0, %v413
  %v415 = vpop.f32.mrf.mxu0
  %416 = vmatprep.mubr.f32.mxu0 0.0
  %417 = vmatmul.mubr.f32.gmra.mxu0 %v247
  %v418 = vpop.f32.mrf.mxu0
  %v419 = vadd.f32 0.0, %v418
  %v420 = vpop.f32.mrf.mxu0
  %421 = vmatprep.mubr.f32.mxu0 0.0
  %422 = vmatmul.mubr.f32.gmra.mxu0 %v250
  %v423 = vpop.f32.mrf.mxu0
  %v424 = vadd.f32 0.0, %v423
  %v425 = vpop.f32.mrf.mxu0
  %426 = vmatprep.mubr.f32.mxu0 0.0
  %427 = vmatmul.mubr.f32.gmra.mxu0 %v253
  %v428 = vpop.f32.mrf.mxu0
  %v429 = vadd.f32 0.0, %v428
  %v430 = vpop.f32.mrf.mxu0
  %431 = vmatprep.mubr.f32.mxu0 0.0
  %432 = vmatmul.mubr.f32.gmra.mxu0 %v256
  %v433 = vpop.f32.mrf.mxu0
  %v434 = vadd.f32 0.0, %v433
  %v435 = vpop.f32.mrf.mxu0
  %436 = vmatprep.mubr.f32.mxu0 0.0
  %437 = vmatmul.mubr.f32.gmra.mxu0 %v259
  %v438 = vpop.f32.mrf.mxu0
  %v439 = vadd.f32 0.0, %v438
  %v440 = vpop.f32.mrf.mxu0
  %441 = vmatprep.mubr.f32.mxu0 0.0
  %442 = vmatmul.mubr.f32.gmra.mxu0 %v262
  %v443 = vpop.f32.mrf.mxu0
  %v444 = vadd.f32 0.0, %v443
  %v445 = vpop.f32.mrf.mxu0
  %446 = vmatprep.mubr.f32.mxu0 0.0
  %447 = vmatmul.mubr.f32.gmra.mxu0 %v265
  %v448 = vpop.f32.mrf.mxu0
  %v449 = vadd.f32 0.0, %v448
  %v450 = vpop.f32.mrf.mxu0
  %451 = vmatprep.mubr.f32.mxu0 0.0
  %452 = vmatmul.mubr.f32.gmra.mxu0 %v268
  %v453 = vpop.f32.mrf.mxu0
  %v454 = vadd.f32 0.0, %v453
  %v455 = vpop.f32.mrf.mxu0
  %456 = vmatprep.mubr.f32.mxu0 0.0
  %457 = vmatmul.mubr.f32.gmra.mxu0 %v271
  %v458 = vpop.f32.mrf.mxu0
  %v459 = vadd.f32 0.0, %v458
  %v460 = vpop.f32.mrf.mxu0
  %461 = vmatprep.mubr.f32.mxu0 0.0
  %462 = vmatmul.mubr.f32.gmra.mxu0 %v274
  %v463 = vpop.f32.mrf.mxu0
  %v464 = vadd.f32 0.0, %v463
  %v465 = vpop.f32.mrf.mxu0
  %466 = vmatprep.mubr.f32.mxu0 0.0
  %467 = vmatmul.mubr.f32.gmra.mxu0 %v277
  %v468 = vpop.f32.mrf.mxu0
  %v469 = vadd.f32 0.0, %v468
  %v470 = vpop.f32.mrf.mxu0
  %471 = vmatprep.mubr.f32.mxu0 0.0
  %472 = vmatmul.mubr.f32.gmra.mxu0 %v280
  %v473 = vpop.f32.mrf.mxu0
  %v474 = vadd.f32 0.0, %v473
  %v475 = vpop.f32.mrf.mxu0
  %476 = vmatprep.mubr.f32.mxu0 0.0
  %477 = vmatmul.mubr.f32.gmra.mxu0 %v283
  %v478 = vpop.f32.mrf.mxu0
  %v479 = vadd.f32 0.0, %v478
  %v480 = vpop.f32.mrf.mxu0
  %481 = vmatprep.mubr.f32.mxu0 0.0
  %482 = vmatmul.mubr.f32.gmra.mxu0 %v286
  %v483 = vpop.f32.mrf.mxu0
  %v484 = vadd.f32 0.0, %v483
  %v485 = vpop.f32.mrf.mxu0
  %486 = vmatprep.mubr.f32.mxu0 0.0
  %487 = vmatmul.mubr.f32.gmra.mxu0 %v289
  %v488 = vpop.f32.mrf.mxu0
  %v489 = vadd.f32 0.0, %v488
  %v490 = vpop.f32.mrf.mxu0
  %491 = vmatprep.mubr.f32.mxu0 0.0
  %492 = vmatmul.mubr.f32.gmra.mxu0 %v292
  %v493 = vpop.f32.mrf.mxu0
  %v494 = vadd.f32 0.0, %v493
  %v495 = vpop.f32.mrf.mxu0
  %496 = vmatprep.mubr.f32.mxu0 0.0
  %497 = vmatmul.mubr.f32.gmra.mxu0 %v295
  %v498 = vpop.f32.mrf.mxu0
  %v499 = vadd.f32 0.0, %v498
  %v500 = vpop.f32.mrf.mxu0
  %501 = vmatprep.mubr.f32.mxu0 0.0
  %502 = vmatmul.mubr.f32.gmra.mxu0 %v298
  %v503 = vpop.f32.mrf.mxu0
  %v504 = vadd.f32 0.0, %v503
  %v505 = vpop.f32.mrf.mxu0
  %506 = vmatprep.mubr.f32.mxu0 0.0
  %507 = vmatmul.mubr.f32.gmra.mxu0 %v301
  %v508 = vpop.f32.mrf.mxu0
  %v509 = vadd.f32 0.0, %v508
  %v510 = vpop.f32.mrf.mxu0
  %511 = vmatprep.mubr.f32.mxu0 0.0
  %512 = vmatmul.mubr.f32.gmra.mxu0 %v304
  %v513 = vpop.f32.mrf.mxu0
  %v514 = vadd.f32 0.0, %v513
  %v515 = vpop.f32.mrf.mxu0
  %516 = vmatprep.mubr.f32.mxu0 0.0
  %517 = vmatmul.mubr.f32.gmra.mxu0 %v307
  %v518 = vpop.f32.mrf.mxu0
  %v519 = vadd.f32 0.0, %v518
  %v520 = vpop.f32.mrf.mxu0
  %521 = vmatprep.mubr.f32.mxu0 0.0
  %522 = vmatmul.mubr.f32.gmra.mxu0 %v310
  %v523 = vpop.f32.mrf.mxu0
  %v524 = vadd.f32 0.0, %v523
  %v525 = vpop.f32.mrf.mxu0
  %526 = vmatprep.mubr.f32.mxu0 0.0
  %527 = vmatmul.mubr.f32.gmra.mxu0 %v313
  %v528 = vpop.f32.mrf.mxu0
  %v529 = vadd.f32 0.0, %v528
  %v530 = vpop.f32.mrf.mxu0
  %531 = vmatprep.mubr.f32.mxu0 0.0
  %532 = vmatmul.mubr.f32.gmra.mxu0 %v316
  %v533 = vpop.f32.mrf.mxu0
  %v534 = vadd.f32 0.0, %v533
  %v535 = vpop.f32.mrf.mxu0
  %536 = vmatprep.mubr.f32.mxu0 0.0
  %537 = vmatmul.mubr.f32.gmra.mxu0 %v319
  %v538 = vpop.f32.mrf.mxu0
  %v539 = vadd.f32 0.0, %v538
  %v540 = vpop.f32.mrf.mxu0
  %541 = vmatprep.mubr.f32.mxu0 0.0
  %542 = vmatmul.mubr.f32.gmra.mxu0 %v322
  %v543 = vpop.f32.mrf.mxu0
  %v544 = vadd.f32 0.0, %v543
  %v545 = vpop.f32.mrf.mxu0
  %546 = vmatprep.mubr.f32.mxu0 0.0
  %547 = vmatmul.mubr.f32.gmra.mxu0 %v325
  %v548 = vpop.f32.mrf.mxu0
  %v549 = vadd.f32 0.0, %v548
  %v550 = vpop.f32.mrf.mxu0
  %551 = vdwg.mxu0
  %s552 = smul.u32 8, 32
  %s553 = smul.u32 %s552, 2
  %s554 = sshll.u32 %s553, 4
  %555 = dma.done [#allocation3], %s554
  %v556 = vld [vmem:[#allocation2] sm:$0xff]
  %v557 = vld [vmem:[#allocation2 + $0x8] sm:$0xff]
  %v558 = vld [vmem:[#allocation2 + $0x10] sm:$0xff]
  %v559 = vld [vmem:[#allocation2 + $0x18] sm:$0xff]
  %v560 = vld [vmem:[#allocation2 + $0x20] sm:$0xff]
  %v561 = vld [vmem:[#allocation2 + $0x28] sm:$0xff]
  %v562 = vld [vmem:[#allocation2 + $0x30] sm:$0xff]
  %v563 = vld [vmem:[#allocation2 + $0x38] sm:$0xff]
  %v564 = vld [vmem:[#allocation2 + $0x40] sm:$0xff]
  %v565 = vld [vmem:[#allocation2 + $0x48] sm:$0xff]
  %v566 = vld [vmem:[#allocation2 + $0x50] sm:$0xff]
  %v567 = vld [vmem:[#allocation2 + $0x58] sm:$0xff]
  %v568 = vld [vmem:[#allocation2 + $0x60] sm:$0xff]
  %v569 = vld [vmem:[#allocation2 + $0x68] sm:$0xff]
  %v570 = vld [vmem:[#allocation2 + $0x70] sm:$0xff]
  %v571 = vld [vmem:[#allocation2 + $0x78] sm:$0xff]
  %v572 = vld [vmem:[#allocation2 + $0x80] sm:$0xff]
  %v573 = vld [vmem:[#allocation2 + $0x88] sm:$0xff]
  %v574 = vld [vmem:[#allocation2 + $0x90] sm:$0xff]
  %v575 = vld [vmem:[#allocation2 + $0x98] sm:$0xff]
  %v576 = vld [vmem:[#allocation2 + $0xa0] sm:$0xff]
  %v577 = vld [vmem:[#allocation2 + $0xa8] sm:$0xff]
  %v578 = vld [vmem:[#allocation2 + $0xb0] sm:$0xff]
  %v579 = vld [vmem:[#allocation2 + $0xb8] sm:$0xff]
  %v580 = vld [vmem:[#allocation2 + $0xc0] sm:$0xff]
  %v581 = vld [vmem:[#allocation2 + $0xc8] sm:$0xff]
  %v582 = vld [vmem:[#allocation2 + $0xd0] sm:$0xff]
  %v583 = vld [vmem:[#allocation2 + $0xd8] sm:$0xff]
  %v584 = vld [vmem:[#allocation2 + $0xe0] sm:$0xff]
  %v585 = vld [vmem:[#allocation2 + $0xe8] sm:$0xff]
  %v586 = vld [vmem:[#allocation2 + $0xf0] sm:$0xff]
  %v587 = vld [vmem:[#allocation2 + $0xf8] sm:$0xff]
  %v588 = vld [vmem:[#allocation2 + $0x100] sm:$0xff]
  %v589 = vld [vmem:[#allocation2 + $0x108] sm:$0xff]
  %v590 = vld [vmem:[#allocation2 + $0x110] sm:$0xff]
  %v591 = vld [vmem:[#allocation2 + $0x118] sm:$0xff]
  %v592 = vld [vmem:[#allocation2 + $0x120] sm:$0xff]
  %v593 = vld [vmem:[#allocation2 + $0x128] sm:$0xff]
  %v594 = vld [vmem:[#allocation2 + $0x130] sm:$0xff]
  %v595 = vld [vmem:[#allocation2 + $0x138] sm:$0xff]
  %v596 = vld [vmem:[#allocation2 + $0x140] sm:$0xff]
  %v597 = vld [vmem:[#allocation2 + $0x148] sm:$0xff]
  %v598 = vld [vmem:[#allocation2 + $0x150] sm:$0xff]
  %v599 = vld [vmem:[#allocation2 + $0x158] sm:$0xff]
  %v600 = vld [vmem:[#allocation2 + $0x160] sm:$0xff]
  %v601 = vld [vmem:[#allocation2 + $0x168] sm:$0xff]
  %v602 = vld [vmem:[#allocation2 + $0x170] sm:$0xff]
  %v603 = vld [vmem:[#allocation2 + $0x178] sm:$0xff]
  %v604 = vld [vmem:[#allocation2 + $0x180] sm:$0xff]
  %v605 = vld [vmem:[#allocation2 + $0x188] sm:$0xff]
  %v606 = vld [vmem:[#allocation2 + $0x190] sm:$0xff]
  %v607 = vld [vmem:[#allocation2 + $0x198] sm:$0xff]
  %v608 = vld [vmem:[#allocation2 + $0x1a0] sm:$0xff]
  %v609 = vld [vmem:[#allocation2 + $0x1a8] sm:$0xff]
  %v610 = vld [vmem:[#allocation2 + $0x1b0] sm:$0xff]
  %v611 = vld [vmem:[#allocation2 + $0x1b8] sm:$0xff]
  %v612 = vld [vmem:[#allocation2 + $0x1c0] sm:$0xff]
  %v613 = vld [vmem:[#allocation2 + $0x1c8] sm:$0xff]
  %v614 = vld [vmem:[#allocation2 + $0x1d0] sm:$0xff]
  %v615 = vld [vmem:[#allocation2 + $0x1d8] sm:$0xff]
  %v616 = vld [vmem:[#allocation2 + $0x1e0] sm:$0xff]
  %v617 = vld [vmem:[#allocation2 + $0x1e8] sm:$0xff]
  %v618 = vld [vmem:[#allocation2 + $0x1f0] sm:$0xff]
  %v619 = vld [vmem:[#allocation2 + $0x1f8] sm:$0xff]
  %v620 = vld [vmem:[%s3] sm:$0x1]
  %v622 = vlaneseq
  %v623 = vshrl.u32 %v622, 7
  %v624 = vsub.s32 0, %v623
  %v625 = vrot.slane %v620, %v624
  %627 = vmatprep.subr.mxu0 0.0
  %628 = vmatpush1.msra.mxu0 %v469
  %629 = vmatprep.subr.mxu0 0.0
  %630 = vmatpush1.msra.mxu0 %v464
  %631 = vmatprep.subr.mxu0 0.0
  %632 = vmatpush1.msra.mxu0 %v459
  %633 = vmatprep.subr.mxu0 0.0
  %634 = vmatpush1.msra.mxu0 %v454
  %635 = vmatprep.subr.mxu0 0.0
  %636 = vmatpush1.msra.mxu0 %v449
  %637 = vmatprep.subr.mxu0 0.0
  %638 = vmatpush1.msra.mxu0 %v444
  %639 = vmatprep.subr.mxu0 0.0
  %640 = vmatpush1.msra.mxu0 %v439
  %641 = vmatprep.subr.mxu0 0.0
  %642 = vmatpush1.msra.mxu0 %v434
  %643 = vmatprep.subr.mxu0 0.0
  %644 = vmatpush1.msra.mxu0 %v429
  %645 = vmatprep.subr.mxu0 0.0
  %646 = vmatpush1.msra.mxu0 %v424
  %647 = vmatprep.subr.mxu0 0.0
  %648 = vmatpush1.msra.mxu0 %v419
  %649 = vmatprep.subr.mxu0 0.0
  %650 = vmatpush1.msra.mxu0 %v414
  %651 = vmatprep.subr.mxu0 0.0
  %652 = vmatpush1.msra.mxu0 %v409
  %653 = vmatprep.subr.mxu0 0.0
  %654 = vmatpush1.msra.mxu0 %v404
  %655 = vmatprep.subr.mxu0 0.0
  %656 = vmatpush1.msra.mxu0 %v399
  %657 = vmatprep.subr.mxu0 0.0
  %658 = vmatpush1.msra.mxu0 %v394
  %659 = vmatprep.subr.mxu0 0.0
  %660 = vmatpush2.msra.mxu0 %v549
  %661 = vmatprep.subr.mxu0 0.0
  %662 = vmatpush2.msra.mxu0 %v544
  %663 = vmatprep.subr.mxu0 0.0
  %664 = vmatpush2.msra.mxu0 %v539
  %665 = vmatprep.subr.mxu0 0.0
  %666 = vmatpush2.msra.mxu0 %v534
  %667 = vmatprep.subr.mxu0 0.0
  %668 = vmatpush2.msra.mxu0 %v529
  %669 = vmatprep.subr.mxu0 0.0
  %670 = vmatpush2.msra.mxu0 %v524
  %671 = vmatprep.subr.mxu0 0.0
  %672 = vmatpush2.msra.mxu0 %v519
  %673 = vmatprep.subr.mxu0 0.0
  %674 = vmatpush2.msra.mxu0 %v514
  %675 = vmatprep.subr.mxu0 0.0
  %676 = vmatpush2.msra.mxu0 %v509
  %677 = vmatprep.subr.mxu0 0.0
  %678 = vmatpush2.msra.mxu0 %v504
  %679 = vmatprep.subr.mxu0 0.0
  %680 = vmatpush2.msra.mxu0 %v499
  %681 = vmatprep.subr.mxu0 0.0
  %682 = vmatpush2.msra.mxu0 %v494
  %683 = vmatprep.subr.mxu0 0.0
  %684 = vmatpush2.msra.mxu0 %v489
  %685 = vmatprep.subr.mxu0 0.0
  %686 = vmatpush2.msra.mxu0 %v484
  %687 = vmatprep.subr.mxu0 0.0
  %688 = vmatpush2.msra.mxu0 %v479
  %689 = vmatprep.subr.mxu0 0.0
  %690 = vmatpush2.msra.mxu0 %v474
  %691 = vmatprep.mubr.f32.mxu0 %v557
  %692 = vmatmul.mubr.f32.gmra.mxu0 %v556
  %v693 = vpop.f32.mrf.mxu0
  %v694 = vadd.f32 %v625, %v693
  %v695 = vpop.f32.mrf.mxu0
  %696 = vmatprep.mubr.f32.mxu0 %v559
  %697 = vmatmul.mubr.f32.gmra.mxu0 %v558
  %v698 = vpop.f32.mrf.mxu0
  %v699 = vadd.f32 %v625, %v698
  %v700 = vpop.f32.mrf.mxu0
  %701 = vmatprep.mubr.f32.mxu0 %v561
  %702 = vmatmul.mubr.f32.gmra.mxu0 %v560
  %v703 = vpop.f32.mrf.mxu0
  %v704 = vadd.f32 %v625, %v703
  %v705 = vpop.f32.mrf.mxu0
  %706 = vmatprep.mubr.f32.mxu0 %v563
  %707 = vmatmul.mubr.f32.gmra.mxu0 %v562
  %v708 = vpop.f32.mrf.mxu0
  %v709 = vadd.f32 %v625, %v708
  %v710 = vpop.f32.mrf.mxu0
  %711 = vmatprep.mubr.f32.mxu0 %v565
  %712 = vmatmul.mubr.f32.gmra.mxu0 %v564
  %v713 = vpop.f32.mrf.mxu0
  %v714 = vadd.f32 %v625, %v713
  %v715 = vpop.f32.mrf.mxu0
  %716 = vmatprep.mubr.f32.mxu0 %v567
  %717 = vmatmul.mubr.f32.gmra.mxu0 %v566
  %v718 = vpop.f32.mrf.mxu0
  %v719 = vadd.f32 %v625, %v718
  %v720 = vpop.f32.mrf.mxu0
  %721 = vmatprep.mubr.f32.mxu0 %v569
  %722 = vmatmul.mubr.f32.gmra.mxu0 %v568
  %v723 = vpop.f32.mrf.mxu0
  %v724 = vadd.f32 %v625, %v723
  %v725 = vpop.f32.mrf.mxu0
  %726 = vmatprep.mubr.f32.mxu0 %v571
  %727 = vmatmul.mubr.f32.gmra.mxu0 %v570
  %v728 = vpop.f32.mrf.mxu0
  %v729 = vadd.f32 %v625, %v728
  %v730 = vpop.f32.mrf.mxu0
  %731 = vmatprep.mubr.f32.mxu0 %v573
  %732 = vmatmul.mubr.f32.gmra.mxu0 %v572
  %v733 = vpop.f32.mrf.mxu0
  %v734 = vadd.f32 %v625, %v733
  %v735 = vpop.f32.mrf.mxu0
  %736 = vmatprep.mubr.f32.mxu0 %v575
  %737 = vmatmul.mubr.f32.gmra.mxu0 %v574
  %v738 = vpop.f32.mrf.mxu0
  %v739 = vadd.f32 %v625, %v738
  %v740 = vpop.f32.mrf.mxu0
  %741 = vmatprep.mubr.f32.mxu0 %v577
  %742 = vmatmul.mubr.f32.gmra.mxu0 %v576
  %v743 = vpop.f32.mrf.mxu0
  %v744 = vadd.f32 %v625, %v743
  %v745 = vpop.f32.mrf.mxu0
  %746 = vmatprep.mubr.f32.mxu0 %v579
  %747 = vmatmul.mubr.f32.gmra.mxu0 %v578
  %v748 = vpop.f32.mrf.mxu0
  %v749 = vadd.f32 %v625, %v748
  %v750 = vpop.f32.mrf.mxu0
  %751 = vmatprep.mubr.f32.mxu0 %v581
  %752 = vmatmul.mubr.f32.gmra.mxu0 %v580
  %v753 = vpop.f32.mrf.mxu0
  %v754 = vadd.f32 %v625, %v753
  %v755 = vpop.f32.mrf.mxu0
  %756 = vmatprep.mubr.f32.mxu0 %v583
  %757 = vmatmul.mubr.f32.gmra.mxu0 %v582
  %v758 = vpop.f32.mrf.mxu0
  %v759 = vadd.f32 %v625, %v758
  %v760 = vpop.f32.mrf.mxu0
  %761 = vmatprep.mubr.f32.mxu0 %v585
  %762 = vmatmul.mubr.f32.gmra.mxu0 %v584
  %v763 = vpop.f32.mrf.mxu0
  %v764 = vadd.f32 %v625, %v763
  %v765 = vpop.f32.mrf.mxu0
  %766 = vmatprep.mubr.f32.mxu0 %v587
  %767 = vmatmul.mubr.f32.gmra.mxu0 %v586
  %v768 = vpop.f32.mrf.mxu0
  %v769 = vadd.f32 %v625, %v768
  %v770 = vpop.f32.mrf.mxu0
  %771 = vmatprep.mubr.f32.mxu0 %v589
  %772 = vmatmul.mubr.f32.gmra.mxu0 %v588
  %v773 = vpop.f32.mrf.mxu0
  %v774 = vadd.f32 %v625, %v773
  %v775 = vpop.f32.mrf.mxu0
  %776 = vmatprep.mubr.f32.mxu0 %v591
  %777 = vmatmul.mubr.f32.gmra.mxu0 %v590
  %v778 = vpop.f32.mrf.mxu0
  %v779 = vadd.f32 %v625, %v778
  %v780 = vpop.f32.mrf.mxu0
  %781 = vmatprep.mubr.f32.mxu0 %v593
  %782 = vmatmul.mubr.f32.gmra.mxu0 %v592
  %v783 = vpop.f32.mrf.mxu0
  %v784 = vadd.f32 %v625, %v783
  %v785 = vpop.f32.mrf.mxu0
  %786 = vmatprep.mubr.f32.mxu0 %v595
  %787 = vmatmul.mubr.f32.gmra.mxu0 %v594
  %v788 = vpop.f32.mrf.mxu0
  %v789 = vadd.f32 %v625, %v788
  %v790 = vpop.f32.mrf.mxu0
  %791 = vmatprep.mubr.f32.mxu0 %v597
  %792 = vmatmul.mubr.f32.gmra.mxu0 %v596
  %v793 = vpop.f32.mrf.mxu0
  %v794 = vadd.f32 %v625, %v793
  %v795 = vpop.f32.mrf.mxu0
  %796 = vmatprep.mubr.f32.mxu0 %v599
  %797 = vmatmul.mubr.f32.gmra.mxu0 %v598
  %v798 = vpop.f32.mrf.mxu0
  %v799 = vadd.f32 %v625, %v798
  %v800 = vpop.f32.mrf.mxu0
  %801 = vmatprep.mubr.f32.mxu0 %v601
  %802 = vmatmul.mubr.f32.gmra.mxu0 %v600
  %v803 = vpop.f32.mrf.mxu0
  %v804 = vadd.f32 %v625, %v803
  %v805 = vpop.f32.mrf.mxu0
  %806 = vmatprep.mubr.f32.mxu0 %v603
  %807 = vmatmul.mubr.f32.gmra.mxu0 %v602
  %v808 = vpop.f32.mrf.mxu0
  %v809 = vadd.f32 %v625, %v808
  %v810 = vpop.f32.mrf.mxu0
  %811 = vmatprep.mubr.f32.mxu0 %v605
  %812 = vmatmul.mubr.f32.gmra.mxu0 %v604
  %v813 = vpop.f32.mrf.mxu0
  %v814 = vadd.f32 %v625, %v813
  %v815 = vpop.f32.mrf.mxu0
  %816 = vmatprep.mubr.f32.mxu0 %v607
  %817 = vmatmul.mubr.f32.gmra.mxu0 %v606
  %v818 = vpop.f32.mrf.mxu0
  %v819 = vadd.f32 %v625, %v818
  %v820 = vpop.f32.mrf.mxu0
  %821 = vmatprep.mubr.f32.mxu0 %v609
  %822 = vmatmul.mubr.f32.gmra.mxu0 %v608
  %v823 = vpop.f32.mrf.mxu0
  %v824 = vadd.f32 %v625, %v823
  %v825 = vpop.f32.mrf.mxu0
  %826 = vmatprep.mubr.f32.mxu0 %v611
  %827 = vmatmul.mubr.f32.gmra.mxu0 %v610
  %v828 = vpop.f32.mrf.mxu0
  %v829 = vadd.f32 %v625, %v828
  %v830 = vpop.f32.mrf.mxu0
  %831 = vmatprep.mubr.f32.mxu0 %v613
  %832 = vmatmul.mubr.f32.gmra.mxu0 %v612
  %v833 = vpop.f32.mrf.mxu0
  %v834 = vadd.f32 %v625, %v833
  %v835 = vpop.f32.mrf.mxu0
  %836 = vmatprep.mubr.f32.mxu0 %v615
  %837 = vmatmul.mubr.f32.gmra.mxu0 %v614
  %v838 = vpop.f32.mrf.mxu0
  %v839 = vadd.f32 %v625, %v838
  %v840 = vpop.f32.mrf.mxu0
  %841 = vmatprep.mubr.f32.mxu0 %v617
  %842 = vmatmul.mubr.f32.gmra.mxu0 %v616
  %v843 = vpop.f32.mrf.mxu0
  %v844 = vadd.f32 %v625, %v843
  %v845 = vpop.f32.mrf.mxu0
  %846 = vmatprep.mubr.f32.mxu0 %v619
  %847 = vmatmul.mubr.f32.gmra.mxu0 %v618
  %v848 = vpop.f32.mrf.mxu0
  %v849 = vadd.f32 %v625, %v848
  %v850 = vpop.f32.mrf.mxu0
  %851 = vdwg.mxu0
  %v852 = vmax.f32 %v694, 0.0
  %v853 = vmax.f32 %v699, 0.0
  %v854 = vmax.f32 %v704, 0.0
  %v855 = vmax.f32 %v709, 0.0
  %v856 = vmax.f32 %v714, 0.0
  %v857 = vmax.f32 %v719, 0.0
  %v858 = vmax.f32 %v724, 0.0
  %v859 = vmax.f32 %v729, 0.0
  %v860 = vmax.f32 %v734, 0.0
  %v861 = vmax.f32 %v739, 0.0
  %v862 = vmax.f32 %v744, 0.0
  %v863 = vmax.f32 %v749, 0.0
  %v864 = vmax.f32 %v754, 0.0
  %v865 = vmax.f32 %v759, 0.0
  %v866 = vmax.f32 %v764, 0.0
  %v867 = vmax.f32 %v769, 0.0
  %v868 = vmax.f32 %v774, 0.0
  %v869 = vmax.f32 %v779, 0.0
  %v870 = vmax.f32 %v784, 0.0
  %v871 = vmax.f32 %v789, 0.0
  %v872 = vmax.f32 %v794, 0.0
  %v873 = vmax.f32 %v799, 0.0
  %v874 = vmax.f32 %v804, 0.0
  %v875 = vmax.f32 %v809, 0.0
  %v876 = vmax.f32 %v814, 0.0
  %v877 = vmax.f32 %v819, 0.0
  %v878 = vmax.f32 %v824, 0.0
  %v879 = vmax.f32 %v829, 0.0
  %v880 = vmax.f32 %v834, 0.0
  %v881 = vmax.f32 %v839, 0.0
  %v882 = vmax.f32 %v844, 0.0
  %v883 = vmax.f32 %v849, 0.0
  %v884 = vld [vmem:[%s4] sm:$0xff]
  %v885 = vld [vmem:[%s4 + $0x8] sm:$0xff]
  %v886 = vld [vmem:[%s4 + $0x10] sm:$0xff]
  %v887 = vld [vmem:[%s4 + $0x18] sm:$0xff]
  %vm888 = vcmask 261120
  %v890 = vsel %vm888, %v852, 0
  %v893 = vsel %vm888, %v853, 0
  %v896 = vsel %vm888, %v854, 0
  %v899 = vsel %vm888, %v855, 0
  %v902 = vsel %vm888, %v856, 0
  %v905 = vsel %vm888, %v857, 0
  %v908 = vsel %vm888, %v858, 0
  %v911 = vsel %vm888, %v859, 0
  %v914 = vsel %vm888, %v860, 0
  %v917 = vsel %vm888, %v861, 0
  %v920 = vsel %vm888, %v862, 0
  %v923 = vsel %vm888, %v863, 0
  %v926 = vsel %vm888, %v864, 0
  %v929 = vsel %vm888, %v865, 0
  %v932 = vsel %vm888, %v866, 0
  %v935 = vsel %vm888, %v867, 0
  %v938 = vsel %vm888, %v868, 0
  %v941 = vsel %vm888, %v869, 0
  %v944 = vsel %vm888, %v870, 0
  %v947 = vsel %vm888, %v871, 0
  %v950 = vsel %vm888, %v872, 0
  %v953 = vsel %vm888, %v873, 0
  %v956 = vsel %vm888, %v874, 0
  %v959 = vsel %vm888, %v875, 0
  %v962 = vsel %vm888, %v876, 0
  %v965 = vsel %vm888, %v877, 0
  %v968 = vsel %vm888, %v878, 0
  %v971 = vsel %vm888, %v879, 0
  %v974 = vsel %vm888, %v880, 0
  %v977 = vsel %vm888, %v881, 0
  %v980 = vsel %vm888, %v882, 0
  %v983 = vsel %vm888, %v883, 0
  %985 = vmatprep.subr.mxu0 0.0
  %986 = vmatpush1.msra.mxu0 0.0
  %987 = vmatprep.subr.mxu0 0.0
  %988 = vmatpush1.msra.mxu0 0.0
  %989 = vmatprep.subr.mxu0 0.0
  %990 = vmatpush1.msra.mxu0 0.0
  %991 = vmatprep.subr.mxu0 0.0
  %992 = vmatpush1.msra.mxu0 0.0
  %993 = vmatprep.subr.mxu0 0.0
  %994 = vmatpush1.msra.mxu0 0.0
  %995 = vmatprep.subr.mxu0 0.0
  %996 = vmatpush1.msra.mxu0 0.0
  %997 = vmatprep.subr.mxu0 0.0
  %998 = vmatpush1.msra.mxu0 0.0
  %999 = vmatprep.subr.mxu0 0.0
  %1000 = vmatpush1.msra.mxu0 0.0
  %1001 = vmatprep.subr.mxu0 0.0
  %1002 = vmatpush1.msra.mxu0 0.0
  %1003 = vmatprep.subr.mxu0 0.0
  %1004 = vmatpush1.msra.mxu0 0.0
  %1005 = vmatprep.subr.mxu0 0.0
  %1006 = vmatpush1.msra.mxu0 0.0
  %1007 = vmatprep.subr.mxu0 0.0
  %1008 = vmatpush1.msra.mxu0 0.0
  %1009 = vmatprep.subr.mxu0 0.0
  %1010 = vmatpush1.msra.mxu0 %v887
  %1011 = vmatprep.subr.mxu0 0.0
  %1012 = vmatpush1.msra.mxu0 %v886
  %1013 = vmatprep.subr.mxu0 0.0
  %1014 = vmatpush1.msra.mxu0 %v885
  %1015 = vmatprep.subr.mxu0 0.0
  %1016 = vmatpush1.msra.mxu0 %v884
  %1017 = vmatprep.subr.mxu0 0.0
  %1018 = vmatpush2.msra.mxu0 0.0
  %1019 = vmatprep.subr.mxu0 0.0
  %1020 = vmatpush2.msra.mxu0 0.0
  %1021 = vmatprep.subr.mxu0 0.0
  %1022 = vmatpush2.msra.mxu0 0.0
  %1023 = vmatprep.subr.mxu0 0.0
  %1024 = vmatpush2.msra.mxu0 0.0
  %1025 = vmatprep.subr.mxu0 0.0
  %1026 = vmatpush2.msra.mxu0 0.0
  %1027 = vmatprep.subr.mxu0 0.0
  %1028 = vmatpush2.msra.mxu0 0.0
  %1029 = vmatprep.subr.mxu0 0.0
  %1030 = vmatpush2.msra.mxu0 0.0
  %1031 = vmatprep.subr.mxu0 0.0
  %1032 = vmatpush2.msra.mxu0 0.0
  %1033 = vmatprep.subr.mxu0 0.0
  %1034 = vmatpush2.msra.mxu0 0.0
  %1035 = vmatprep.subr.mxu0 0.0
  %1036 = vmatpush2.msra.mxu0 0.0
  %1037 = vmatprep.subr.mxu0 0.0
  %1038 = vmatpush2.msra.mxu0 0.0
  %1039 = vmatprep.subr.mxu0 0.0
  %1040 = vmatpush2.msra.mxu0 0.0
  %1041 = vmatprep.subr.mxu0 0.0
  %1042 = vmatpush2.msra.mxu0 0.0
  %1043 = vmatprep.subr.mxu0 0.0
  %1044 = vmatpush2.msra.mxu0 0.0
  %1045 = vmatprep.subr.mxu0 0.0
  %1046 = vmatpush2.msra.mxu0 0.0
  %1047 = vmatprep.subr.mxu0 0.0
  %1048 = vmatpush2.msra.mxu0 0.0
  %1049 = vmatprep.mubr.f32.mxu0 0.0
  %1050 = vmatmul.mubr.f32.gmra.mxu0 %v890
  %v1051 = vpop.f32.mrf.mxu0
  %v1052 = vadd.f32 0.0, %v1051
  %v1053 = vpop.f32.mrf.mxu0
  %1054 = vmatprep.mubr.f32.mxu0 0.0
  %1055 = vmatmul.mubr.f32.gmra.mxu0 %v893
  %v1056 = vpop.f32.mrf.mxu0
  %v1057 = vadd.f32 0.0, %v1056
  %v1058 = vpop.f32.mrf.mxu0
  %1059 = vmatprep.mubr.f32.mxu0 0.0
  %1060 = vmatmul.mubr.f32.gmra.mxu0 %v896
  %v1061 = vpop.f32.mrf.mxu0
  %v1062 = vadd.f32 0.0, %v1061
  %v1063 = vpop.f32.mrf.mxu0
  %1064 = vmatprep.mubr.f32.mxu0 0.0
  %1065 = vmatmul.mubr.f32.gmra.mxu0 %v899
  %v1066 = vpop.f32.mrf.mxu0
  %v1067 = vadd.f32 0.0, %v1066
  %v1068 = vpop.f32.mrf.mxu0
  %1069 = vmatprep.mubr.f32.mxu0 0.0
  %1070 = vmatmul.mubr.f32.gmra.mxu0 %v902
  %v1071 = vpop.f32.mrf.mxu0
  %v1072 = vadd.f32 0.0, %v1071
  %v1073 = vpop.f32.mrf.mxu0
  %1074 = vmatprep.mubr.f32.mxu0 0.0
  %1075 = vmatmul.mubr.f32.gmra.mxu0 %v905
  %v1076 = vpop.f32.mrf.mxu0
  %v1077 = vadd.f32 0.0, %v1076
  %v1078 = vpop.f32.mrf.mxu0
  %1079 = vmatprep.mubr.f32.mxu0 0.0
  %1080 = vmatmul.mubr.f32.gmra.mxu0 %v908
  %v1081 = vpop.f32.mrf.mxu0
  %v1082 = vadd.f32 0.0, %v1081
  %v1083 = vpop.f32.mrf.mxu0
  %1084 = vmatprep.mubr.f32.mxu0 0.0
  %1085 = vmatmul.mubr.f32.gmra.mxu0 %v911
  %v1086 = vpop.f32.mrf.mxu0
  %v1087 = vadd.f32 0.0, %v1086
  %v1088 = vpop.f32.mrf.mxu0
  %1089 = vmatprep.mubr.f32.mxu0 0.0
  %1090 = vmatmul.mubr.f32.gmra.mxu0 %v914
  %v1091 = vpop.f32.mrf.mxu0
  %v1092 = vadd.f32 0.0, %v1091
  %v1093 = vpop.f32.mrf.mxu0
  %1094 = vmatprep.mubr.f32.mxu0 0.0
  %1095 = vmatmul.mubr.f32.gmra.mxu0 %v917
  %v1096 = vpop.f32.mrf.mxu0
  %v1097 = vadd.f32 0.0, %v1096
  %v1098 = vpop.f32.mrf.mxu0
  %1099 = vmatprep.mubr.f32.mxu0 0.0
  %1100 = vmatmul.mubr.f32.gmra.mxu0 %v920
  %v1101 = vpop.f32.mrf.mxu0
  %v1102 = vadd.f32 0.0, %v1101
  %v1103 = vpop.f32.mrf.mxu0
  %1104 = vmatprep.mubr.f32.mxu0 0.0
  %1105 = vmatmul.mubr.f32.gmra.mxu0 %v923
  %v1106 = vpop.f32.mrf.mxu0
  %v1107 = vadd.f32 0.0, %v1106
  %v1108 = vpop.f32.mrf.mxu0
  %1109 = vmatprep.mubr.f32.mxu0 0.0
  %1110 = vmatmul.mubr.f32.gmra.mxu0 %v926
  %v1111 = vpop.f32.mrf.mxu0
  %v1112 = vadd.f32 0.0, %v1111
  %v1113 = vpop.f32.mrf.mxu0
  %1114 = vmatprep.mubr.f32.mxu0 0.0
  %1115 = vmatmul.mubr.f32.gmra.mxu0 %v929
  %v1116 = vpop.f32.mrf.mxu0
  %v1117 = vadd.f32 0.0, %v1116
  %v1118 = vpop.f32.mrf.mxu0
  %1119 = vmatprep.mubr.f32.mxu0 0.0
  %1120 = vmatmul.mubr.f32.gmra.mxu0 %v932
  %v1121 = vpop.f32.mrf.mxu0
  %v1122 = vadd.f32 0.0, %v1121
  %v1123 = vpop.f32.mrf.mxu0
  %1124 = vmatprep.mubr.f32.mxu0 0.0
  %1125 = vmatmul.mubr.f32.gmra.mxu0 %v935
  %v1126 = vpop.f32.mrf.mxu0
  %v1127 = vadd.f32 0.0, %v1126
  %v1128 = vpop.f32.mrf.mxu0
  %1129 = vmatprep.mubr.f32.mxu0 0.0
  %1130 = vmatmul.mubr.f32.gmra.mxu0 %v938
  %v1131 = vpop.f32.mrf.mxu0
  %v1132 = vadd.f32 0.0, %v1131
  %v1133 = vpop.f32.mrf.mxu0
  %1134 = vmatprep.mubr.f32.mxu0 0.0
  %1135 = vmatmul.mubr.f32.gmra.mxu0 %v941
  %v1136 = vpop.f32.mrf.mxu0
  %v1137 = vadd.f32 0.0, %v1136
  %v1138 = vpop.f32.mrf.mxu0
  %1139 = vmatprep.mubr.f32.mxu0 0.0
  %1140 = vmatmul.mubr.f32.gmra.mxu0 %v944
  %v1141 = vpop.f32.mrf.mxu0
  %v1142 = vadd.f32 0.0, %v1141
  %v1143 = vpop.f32.mrf.mxu0
  %1144 = vmatprep.mubr.f32.mxu0 0.0
  %1145 = vmatmul.mubr.f32.gmra.mxu0 %v947
  %v1146 = vpop.f32.mrf.mxu0
  %v1147 = vadd.f32 0.0, %v1146
  %v1148 = vpop.f32.mrf.mxu0
  %1149 = vmatprep.mubr.f32.mxu0 0.0
  %1150 = vmatmul.mubr.f32.gmra.mxu0 %v950
  %v1151 = vpop.f32.mrf.mxu0
  %v1152 = vadd.f32 0.0, %v1151
  %v1153 = vpop.f32.mrf.mxu0
  %1154 = vmatprep.mubr.f32.mxu0 0.0
  %1155 = vmatmul.mubr.f32.gmra.mxu0 %v953
  %v1156 = vpop.f32.mrf.mxu0
  %v1157 = vadd.f32 0.0, %v1156
  %v1158 = vpop.f32.mrf.mxu0
  %1159 = vmatprep.mubr.f32.mxu0 0.0
  %1160 = vmatmul.mubr.f32.gmra.mxu0 %v956
  %v1161 = vpop.f32.mrf.mxu0
  %v1162 = vadd.f32 0.0, %v1161
  %v1163 = vpop.f32.mrf.mxu0
  %1164 = vmatprep.mubr.f32.mxu0 0.0
  %1165 = vmatmul.mubr.f32.gmra.mxu0 %v959
  %v1166 = vpop.f32.mrf.mxu0
  %v1167 = vadd.f32 0.0, %v1166
  %v1168 = vpop.f32.mrf.mxu0
  %1169 = vmatprep.mubr.f32.mxu0 0.0
  %1170 = vmatmul.mubr.f32.gmra.mxu0 %v962
  %v1171 = vpop.f32.mrf.mxu0
  %v1172 = vadd.f32 0.0, %v1171
  %v1173 = vpop.f32.mrf.mxu0
  %1174 = vmatprep.mubr.f32.mxu0 0.0
  %1175 = vmatmul.mubr.f32.gmra.mxu0 %v965
  %v1176 = vpop.f32.mrf.mxu0
  %v1177 = vadd.f32 0.0, %v1176
  %v1178 = vpop.f32.mrf.mxu0
  %1179 = vmatprep.mubr.f32.mxu0 0.0
  %1180 = vmatmul.mubr.f32.gmra.mxu0 %v968
  %v1181 = vpop.f32.mrf.mxu0
  %v1182 = vadd.f32 0.0, %v1181
  %v1183 = vpop.f32.mrf.mxu0
  %1184 = vmatprep.mubr.f32.mxu0 0.0
  %1185 = vmatmul.mubr.f32.gmra.mxu0 %v971
  %v1186 = vpop.f32.mrf.mxu0
  %v1187 = vadd.f32 0.0, %v1186
  %v1188 = vpop.f32.mrf.mxu0
  %1189 = vmatprep.mubr.f32.mxu0 0.0
  %1190 = vmatmul.mubr.f32.gmra.mxu0 %v974
  %v1191 = vpop.f32.mrf.mxu0
  %v1192 = vadd.f32 0.0, %v1191
  %v1193 = vpop.f32.mrf.mxu0
  %1194 = vmatprep.mubr.f32.mxu0 0.0
  %1195 = vmatmul.mubr.f32.gmra.mxu0 %v977
  %v1196 = vpop.f32.mrf.mxu0
  %v1197 = vadd.f32 0.0, %v1196
  %v1198 = vpop.f32.mrf.mxu0
  %1199 = vmatprep.mubr.f32.mxu0 0.0
  %1200 = vmatmul.mubr.f32.gmra.mxu0 %v980
  %v1201 = vpop.f32.mrf.mxu0
  %v1202 = vadd.f32 0.0, %v1201
  %v1203 = vpop.f32.mrf.mxu0
  %1204 = vmatprep.mubr.f32.mxu0 0.0
  %1205 = vmatmul.mubr.f32.gmra.mxu0 %v983
  %v1206 = vpop.f32.mrf.mxu0
  %v1207 = vadd.f32 0.0, %v1206
  %v1208 = vpop.f32.mrf.mxu0
  %1209 = vdwg.mxu0
  %v1210 = vld [vmem:[%s5] sm:$0x1]
  %v1212 = vlaneseq
  %v1213 = vshrl.u32 %v1212, 7
  %v1214 = vsub.s32 0, %v1213
  %v1215 = vrot.slane %v1210, %v1214
  %1217 = vmatprep.subr.mxu0 0.0
  %1218 = vmatpush1.msra.mxu0 %v1127
  %1219 = vmatprep.subr.mxu0 0.0
  %1220 = vmatpush1.msra.mxu0 %v1122
  %1221 = vmatprep.subr.mxu0 0.0
  %1222 = vmatpush1.msra.mxu0 %v1117
  %1223 = vmatprep.subr.mxu0 0.0
  %1224 = vmatpush1.msra.mxu0 %v1112
  %1225 = vmatprep.subr.mxu0 0.0
  %1226 = vmatpush1.msra.mxu0 %v1107
  %1227 = vmatprep.subr.mxu0 0.0
  %1228 = vmatpush1.msra.mxu0 %v1102
  %1229 = vmatprep.subr.mxu0 0.0
  %1230 = vmatpush1.msra.mxu0 %v1097
  %1231 = vmatprep.subr.mxu0 0.0
  %1232 = vmatpush1.msra.mxu0 %v1092
  %1233 = vmatprep.subr.mxu0 0.0
  %1234 = vmatpush1.msra.mxu0 %v1087
  %1235 = vmatprep.subr.mxu0 0.0
  %1236 = vmatpush1.msra.mxu0 %v1082
  %1237 = vmatprep.subr.mxu0 0.0
  %1238 = vmatpush1.msra.mxu0 %v1077
  %1239 = vmatprep.subr.mxu0 0.0
  %1240 = vmatpush1.msra.mxu0 %v1072
  %1241 = vmatprep.subr.mxu0 0.0
  %1242 = vmatpush1.msra.mxu0 %v1067
  %1243 = vmatprep.subr.mxu0 0.0
  %1244 = vmatpush1.msra.mxu0 %v1062
  %1245 = vmatprep.subr.mxu0 0.0
  %1246 = vmatpush1.msra.mxu0 %v1057
  %1247 = vmatprep.subr.mxu0 0.0
  %1248 = vmatpush1.msra.mxu0 %v1052
  %1249 = vmatprep.subr.mxu0 0.0
  %1250 = vmatpush2.msra.mxu0 %v1207
  %1251 = vmatprep.subr.mxu0 0.0
  %1252 = vmatpush2.msra.mxu0 %v1202
  %1253 = vmatprep.subr.mxu0 0.0
  %1254 = vmatpush2.msra.mxu0 %v1197
  %1255 = vmatprep.subr.mxu0 0.0
  %1256 = vmatpush2.msra.mxu0 %v1192
  %1257 = vmatprep.subr.mxu0 0.0
  %1258 = vmatpush2.msra.mxu0 %v1187
  %1259 = vmatprep.subr.mxu0 0.0
  %1260 = vmatpush2.msra.mxu0 %v1182
  %1261 = vmatprep.subr.mxu0 0.0
  %1262 = vmatpush2.msra.mxu0 %v1177
  %1263 = vmatprep.subr.mxu0 0.0
  %1264 = vmatpush2.msra.mxu0 %v1172
  %1265 = vmatprep.subr.mxu0 0.0
  %1266 = vmatpush2.msra.mxu0 %v1167
  %1267 = vmatprep.subr.mxu0 0.0
  %1268 = vmatpush2.msra.mxu0 %v1162
  %1269 = vmatprep.subr.mxu0 0.0
  %1270 = vmatpush2.msra.mxu0 %v1157
  %1271 = vmatprep.subr.mxu0 0.0
  %1272 = vmatpush2.msra.mxu0 %v1152
  %1273 = vmatprep.subr.mxu0 0.0
  %1274 = vmatpush2.msra.mxu0 %v1147
  %1275 = vmatprep.subr.mxu0 0.0
  %1276 = vmatpush2.msra.mxu0 %v1142
  %1277 = vmatprep.subr.mxu0 0.0
  %1278 = vmatpush2.msra.mxu0 %v1137
  %1279 = vmatprep.subr.mxu0 0.0
  %1280 = vmatpush2.msra.mxu0 %v1132
  %1281 = vmatprep.mubr.f32.mxu0 %v557
  %1282 = vmatmul.mubr.f32.gmra.mxu0 %v556
  %v1283 = vpop.f32.mrf.mxu0
  %v1284 = vadd.f32 %v1215, %v1283
  %v1285 = vpop.f32.mrf.mxu0
  %1286 = vmatprep.mubr.f32.mxu0 %v559
  %1287 = vmatmul.mubr.f32.gmra.mxu0 %v558
  %v1288 = vpop.f32.mrf.mxu0
  %v1289 = vadd.f32 %v1215, %v1288
  %v1290 = vpop.f32.mrf.mxu0
  %1291 = vmatprep.mubr.f32.mxu0 %v561
  %1292 = vmatmul.mubr.f32.gmra.mxu0 %v560
  %v1293 = vpop.f32.mrf.mxu0
  %v1294 = vadd.f32 %v1215, %v1293
  %v1295 = vpop.f32.mrf.mxu0
  %1296 = vmatprep.mubr.f32.mxu0 %v563
  %1297 = vmatmul.mubr.f32.gmra.mxu0 %v562
  %v1298 = vpop.f32.mrf.mxu0
  %v1299 = vadd.f32 %v1215, %v1298
  %v1300 = vpop.f32.mrf.mxu0
  %1301 = vmatprep.mubr.f32.mxu0 %v565
  %1302 = vmatmul.mubr.f32.gmra.mxu0 %v564
  %v1303 = vpop.f32.mrf.mxu0
  %v1304 = vadd.f32 %v1215, %v1303
  %v1305 = vpop.f32.mrf.mxu0
  %1306 = vmatprep.mubr.f32.mxu0 %v567
  %1307 = vmatmul.mubr.f32.gmra.mxu0 %v566
  %v1308 = vpop.f32.mrf.mxu0
  %v1309 = vadd.f32 %v1215, %v1308
  %v1310 = vpop.f32.mrf.mxu0
  %1311 = vmatprep.mubr.f32.mxu0 %v569
  %1312 = vmatmul.mubr.f32.gmra.mxu0 %v568
  %v1313 = vpop.f32.mrf.mxu0
  %v1314 = vadd.f32 %v1215, %v1313
  %v1315 = vpop.f32.mrf.mxu0
  %1316 = vmatprep.mubr.f32.mxu0 %v571
  %1317 = vmatmul.mubr.f32.gmra.mxu0 %v570
  %v1318 = vpop.f32.mrf.mxu0
  %v1319 = vadd.f32 %v1215, %v1318
  %v1320 = vpop.f32.mrf.mxu0
  %1321 = vmatprep.mubr.f32.mxu0 %v573
  %1322 = vmatmul.mubr.f32.gmra.mxu0 %v572
  %v1323 = vpop.f32.mrf.mxu0
  %v1324 = vadd.f32 %v1215, %v1323
  %v1325 = vpop.f32.mrf.mxu0
  %1326 = vmatprep.mubr.f32.mxu0 %v575
  %1327 = vmatmul.mubr.f32.gmra.mxu0 %v574
  %v1328 = vpop.f32.mrf.mxu0
  %v1329 = vadd.f32 %v1215, %v1328
  %v1330 = vpop.f32.mrf.mxu0
  %1331 = vmatprep.mubr.f32.mxu0 %v577
  %1332 = vmatmul.mubr.f32.gmra.mxu0 %v576
  %v1333 = vpop.f32.mrf.mxu0
  %v1334 = vadd.f32 %v1215, %v1333
  %v1335 = vpop.f32.mrf.mxu0
  %1336 = vmatprep.mubr.f32.mxu0 %v579
  %1337 = vmatmul.mubr.f32.gmra.mxu0 %v578
  %v1338 = vpop.f32.mrf.mxu0
  %v1339 = vadd.f32 %v1215, %v1338
  %v1340 = vpop.f32.mrf.mxu0
  %1341 = vmatprep.mubr.f32.mxu0 %v581
  %1342 = vmatmul.mubr.f32.gmra.mxu0 %v580
  %v1343 = vpop.f32.mrf.mxu0
  %v1344 = vadd.f32 %v1215, %v1343
  %v1345 = vpop.f32.mrf.mxu0
  %1346 = vmatprep.mubr.f32.mxu0 %v583
  %1347 = vmatmul.mubr.f32.gmra.mxu0 %v582
  %v1348 = vpop.f32.mrf.mxu0
  %v1349 = vadd.f32 %v1215, %v1348
  %v1350 = vpop.f32.mrf.mxu0
  %1351 = vmatprep.mubr.f32.mxu0 %v585
  %1352 = vmatmul.mubr.f32.gmra.mxu0 %v584
  %v1353 = vpop.f32.mrf.mxu0
  %v1354 = vadd.f32 %v1215, %v1353
  %v1355 = vpop.f32.mrf.mxu0
  %1356 = vmatprep.mubr.f32.mxu0 %v587
  %1357 = vmatmul.mubr.f32.gmra.mxu0 %v586
  %v1358 = vpop.f32.mrf.mxu0
  %v1359 = vadd.f32 %v1215, %v1358
  %v1360 = vpop.f32.mrf.mxu0
  %1361 = vmatprep.mubr.f32.mxu0 %v589
  %1362 = vmatmul.mubr.f32.gmra.mxu0 %v588
  %v1363 = vpop.f32.mrf.mxu0
  %v1364 = vadd.f32 %v1215, %v1363
  %v1365 = vpop.f32.mrf.mxu0
  %1366 = vmatprep.mubr.f32.mxu0 %v591
  %1367 = vmatmul.mubr.f32.gmra.mxu0 %v590
  %v1368 = vpop.f32.mrf.mxu0
  %v1369 = vadd.f32 %v1215, %v1368
  %v1370 = vpop.f32.mrf.mxu0
  %1371 = vmatprep.mubr.f32.mxu0 %v593
  %1372 = vmatmul.mubr.f32.gmra.mxu0 %v592
  %v1373 = vpop.f32.mrf.mxu0
  %v1374 = vadd.f32 %v1215, %v1373
  %v1375 = vpop.f32.mrf.mxu0
  %1376 = vmatprep.mubr.f32.mxu0 %v595
  %1377 = vmatmul.mubr.f32.gmra.mxu0 %v594
  %v1378 = vpop.f32.mrf.mxu0
  %v1379 = vadd.f32 %v1215, %v1378
  %v1380 = vpop.f32.mrf.mxu0
  %1381 = vmatprep.mubr.f32.mxu0 %v597
  %1382 = vmatmul.mubr.f32.gmra.mxu0 %v596
  %v1383 = vpop.f32.mrf.mxu0
  %v1384 = vadd.f32 %v1215, %v1383
  %v1385 = vpop.f32.mrf.mxu0
  %1386 = vmatprep.mubr.f32.mxu0 %v599
  %1387 = vmatmul.mubr.f32.gmra.mxu0 %v598
  %v1388 = vpop.f32.mrf.mxu0
  %v1389 = vadd.f32 %v1215, %v1388
  %v1390 = vpop.f32.mrf.mxu0
  %1391 = vmatprep.mubr.f32.mxu0 %v601
  %1392 = vmatmul.mubr.f32.gmra.mxu0 %v600
  %v1393 = vpop.f32.mrf.mxu0
  %v1394 = vadd.f32 %v1215, %v1393
  %v1395 = vpop.f32.mrf.mxu0
  %1396 = vmatprep.mubr.f32.mxu0 %v603
  %1397 = vmatmul.mubr.f32.gmra.mxu0 %v602
  %v1398 = vpop.f32.mrf.mxu0
  %v1399 = vadd.f32 %v1215, %v1398
  %v1400 = vpop.f32.mrf.mxu0
  %1401 = vmatprep.mubr.f32.mxu0 %v605
  %1402 = vmatmul.mubr.f32.gmra.mxu0 %v604
  %v1403 = vpop.f32.mrf.mxu0
  %v1404 = vadd.f32 %v1215, %v1403
  %v1405 = vpop.f32.mrf.mxu0
  %1406 = vmatprep.mubr.f32.mxu0 %v607
  %1407 = vmatmul.mubr.f32.gmra.mxu0 %v606
  %v1408 = vpop.f32.mrf.mxu0
  %v1409 = vadd.f32 %v1215, %v1408
  %v1410 = vpop.f32.mrf.mxu0
  %1411 = vmatprep.mubr.f32.mxu0 %v609
  %1412 = vmatmul.mubr.f32.gmra.mxu0 %v608
  %v1413 = vpop.f32.mrf.mxu0
  %v1414 = vadd.f32 %v1215, %v1413
  %v1415 = vpop.f32.mrf.mxu0
  %1416 = vmatprep.mubr.f32.mxu0 %v611
  %1417 = vmatmul.mubr.f32.gmra.mxu0 %v610
  %v1418 = vpop.f32.mrf.mxu0
  %v1419 = vadd.f32 %v1215, %v1418
  %v1420 = vpop.f32.mrf.mxu0
  %1421 = vmatprep.mubr.f32.mxu0 %v613
  %1422 = vmatmul.mubr.f32.gmra.mxu0 %v612
  %v1423 = vpop.f32.mrf.mxu0
  %v1424 = vadd.f32 %v1215, %v1423
  %v1425 = vpop.f32.mrf.mxu0
  %1426 = vmatprep.mubr.f32.mxu0 %v615
  %1427 = vmatmul.mubr.f32.gmra.mxu0 %v614
  %v1428 = vpop.f32.mrf.mxu0
  %v1429 = vadd.f32 %v1215, %v1428
  %v1430 = vpop.f32.mrf.mxu0
  %1431 = vmatprep.mubr.f32.mxu0 %v617
  %1432 = vmatmul.mubr.f32.gmra.mxu0 %v616
  %v1433 = vpop.f32.mrf.mxu0
  %v1434 = vadd.f32 %v1215, %v1433
  %v1435 = vpop.f32.mrf.mxu0
  %1436 = vmatprep.mubr.f32.mxu0 %v619
  %1437 = vmatmul.mubr.f32.gmra.mxu0 %v618
  %v1438 = vpop.f32.mrf.mxu0
  %v1439 = vadd.f32 %v1215, %v1438
  %v1440 = vpop.f32.mrf.mxu0
  %1441 = vdwg.mxu0
  %vm1442 = vcmask 130048
  %v1443 = vsel %vm1442, %v1284, -inf
  %1444 = vmax.xlane.f32.xlu0 %v1443
  %v1445 = vpop.xlane.xlu0 %1444
  %v1446 = vsel %vm1442, %v1289, -inf
  %1447 = vmax.xlane.f32.xlu0 %v1446
  %v1448 = vpop.xlane.xlu0 %1447
  %v1449 = vsel %vm1442, %v1294, -inf
  %1450 = vmax.xlane.f32.xlu0 %v1449
  %v1451 = vpop.xlane.xlu0 %1450
  %v1452 = vsel %vm1442, %v1299, -inf
  %1453 = vmax.xlane.f32.xlu0 %v1452
  %v1454 = vpop.xlane.xlu0 %1453
  %v1455 = vsel %vm1442, %v1304, -inf
  %1456 = vmax.xlane.f32.xlu0 %v1455
  %v1457 = vpop.xlane.xlu0 %1456
  %v1458 = vsel %vm1442, %v1309, -inf
  %1459 = vmax.xlane.f32.xlu0 %v1458
  %v1460 = vpop.xlane.xlu0 %1459
  %v1461 = vsel %vm1442, %v1314, -inf
  %1462 = vmax.xlane.f32.xlu0 %v1461
  %v1463 = vpop.xlane.xlu0 %1462
  %v1464 = vsel %vm1442, %v1319, -inf
  %1465 = vmax.xlane.f32.xlu0 %v1464
  %v1466 = vpop.xlane.xlu0 %1465
  %v1467 = vsel %vm1442, %v1324, -inf
  %1468 = vmax.xlane.f32.xlu0 %v1467
  %v1469 = vpop.xlane.xlu0 %1468
  %v1470 = vsel %vm1442, %v1329, -inf
  %1471 = vmax.xlane.f32.xlu0 %v1470
  %v1472 = vpop.xlane.xlu0 %1471
  %v1473 = vsel %vm1442, %v1334, -inf
  %1474 = vmax.xlane.f32.xlu0 %v1473
  %v1475 = vpop.xlane.xlu0 %1474
  %v1476 = vsel %vm1442, %v1339, -inf
  %1477 = vmax.xlane.f32.xlu0 %v1476
  %v1478 = vpop.xlane.xlu0 %1477
  %v1479 = vsel %vm1442, %v1344, -inf
  %1480 = vmax.xlane.f32.xlu0 %v1479
  %v1481 = vpop.xlane.xlu0 %1480
  %v1482 = vsel %vm1442, %v1349, -inf
  %1483 = vmax.xlane.f32.xlu0 %v1482
  %v1484 = vpop.xlane.xlu0 %1483
  %v1485 = vsel %vm1442, %v1354, -inf
  %1486 = vmax.xlane.f32.xlu0 %v1485
  %v1487 = vpop.xlane.xlu0 %1486
  %v1488 = vsel %vm1442, %v1359, -inf
  %1489 = vmax.xlane.f32.xlu0 %v1488
  %v1490 = vpop.xlane.xlu0 %1489
  %v1491 = vsel %vm1442, %v1364, -inf
  %1492 = vmax.xlane.f32.xlu0 %v1491
  %v1493 = vpop.xlane.xlu0 %1492
  %v1494 = vsel %vm1442, %v1369, -inf
  %1495 = vmax.xlane.f32.xlu0 %v1494
  %v1496 = vpop.xlane.xlu0 %1495
  %v1497 = vsel %vm1442, %v1374, -inf
  %1498 = vmax.xlane.f32.xlu0 %v1497
  %v1499 = vpop.xlane.xlu0 %1498
  %v1500 = vsel %vm1442, %v1379, -inf
  %1501 = vmax.xlane.f32.xlu0 %v1500
  %v1502 = vpop.xlane.xlu0 %1501
  %v1503 = vsel %vm1442, %v1384, -inf
  %1504 = vmax.xlane.f32.xlu0 %v1503
  %v1505 = vpop.xlane.xlu0 %1504
  %v1506 = vsel %vm1442, %v1389, -inf
  %1507 = vmax.xlane.f32.xlu0 %v1506
  %v1508 = vpop.xlane.xlu0 %1507
  %v1509 = vsel %vm1442, %v1394, -inf
  %1510 = vmax.xlane.f32.xlu0 %v1509
  %v1511 = vpop.xlane.xlu0 %1510
  %v1512 = vsel %vm1442, %v1399, -inf
  %1513 = vmax.xlane.f32.xlu0 %v1512
  %v1514 = vpop.xlane.xlu0 %1513
  %v1515 = vsel %vm1442, %v1404, -inf
  %1516 = vmax.xlane.f32.xlu0 %v1515
  %v1517 = vpop.xlane.xlu0 %1516
  %v1518 = vsel %vm1442, %v1409, -inf
  %1519 = vmax.xlane.f32.xlu0 %v1518
  %v1520 = vpop.xlane.xlu0 %1519
  %v1521 = vsel %vm1442, %v1414, -inf
  %1522 = vmax.xlane.f32.xlu0 %v1521
  %v1523 = vpop.xlane.xlu0 %1522
  %v1524 = vsel %vm1442, %v1419, -inf
  %1525 = vmax.xlane.f32.xlu0 %v1524
  %v1526 = vpop.xlane.xlu0 %1525
  %v1527 = vsel %vm1442, %v1424, -inf
  %1528 = vmax.xlane.f32.xlu0 %v1527
  %v1529 = vpop.xlane.xlu0 %1528
  %v1530 = vsel %vm1442, %v1429, -inf
  %1531 = vmax.xlane.f32.xlu0 %v1530
  %v1532 = vpop.xlane.xlu0 %1531
  %v1533 = vsel %vm1442, %v1434, -inf
  %1534 = vmax.xlane.f32.xlu0 %v1533
  %v1535 = vpop.xlane.xlu0 %1534
  %v1536 = vsel %vm1442, %v1439, -inf
  %1537 = vmax.xlane.f32.xlu0 %v1536
  %v1538 = vpop.xlane.xlu0 %1537
  %v1539 = vsub.f32 %v1284, %v1445
  %v1540 = vsub.f32 %v1289, %v1448
  %v1541 = vsub.f32 %v1294, %v1451
  %v1542 = vsub.f32 %v1299, %v1454
  %v1543 = vsub.f32 %v1304, %v1457
  %v1544 = vsub.f32 %v1309, %v1460
  %v1545 = vsub.f32 %v1314, %v1463
  %v1546 = vsub.f32 %v1319, %v1466
  %v1547 = vsub.f32 %v1324, %v1469
  %v1548 = vsub.f32 %v1329, %v1472
  %v1549 = vsub.f32 %v1334, %v1475
  %v1550 = vsub.f32 %v1339, %v1478
  %v1551 = vsub.f32 %v1344, %v1481
  %v1552 = vsub.f32 %v1349, %v1484
  %v1553 = vsub.f32 %v1354, %v1487
  %v1554 = vsub.f32 %v1359, %v1490
  %v1555 = vsub.f32 %v1364, %v1493
  %v1556 = vsub.f32 %v1369, %v1496
  %v1557 = vsub.f32 %v1374, %v1499
  %v1558 = vsub.f32 %v1379, %v1502
  %v1559 = vsub.f32 %v1384, %v1505
  %v1560 = vsub.f32 %v1389, %v1508
  %v1561 = vsub.f32 %v1394, %v1511
  %v1562 = vsub.f32 %v1399, %v1514
  %v1563 = vsub.f32 %v1404, %v1517
  %v1564 = vsub.f32 %v1409, %v1520
  %v1565 = vsub.f32 %v1414, %v1523
  %v1566 = vsub.f32 %v1419, %v1526
  %v1567 = vsub.f32 %v1424, %v1529
  %v1568 = vsub.f32 %v1429, %v1532
  %v1569 = vsub.f32 %v1434, %v1535
  %v1570 = vsub.f32 %v1439, %v1538
  %v1571 = vmul.f32 %v1539, 1.442695
  %v1572 = vpow.pop %v1571
  %v1573 = vmul.f32 %v1540, 1.442695
  %v1574 = vpow.pop %v1573
  %v1575 = vmul.f32 %v1541, 1.442695
  %v1576 = vpow.pop %v1575
  %v1577 = vmul.f32 %v1542, 1.442695
  %v1578 = vpow.pop %v1577
  %v1579 = vmul.f32 %v1543, 1.442695
  %v1580 = vpow.pop %v1579
  %v1581 = vmul.f32 %v1544, 1.442695
  %v1582 = vpow.pop %v1581
  %v1583 = vmul.f32 %v1545, 1.442695
  %v1584 = vpow.pop %v1583
  %v1585 = vmul.f32 %v1546, 1.442695
  %v1586 = vpow.pop %v1585
  %v1587 = vmul.f32 %v1547, 1.442695
  %v1588 = vpow.pop %v1587
  %v1589 = vmul.f32 %v1548, 1.442695
  %v1590 = vpow.pop %v1589
  %v1591 = vmul.f32 %v1549, 1.442695
  %v1592 = vpow.pop %v1591
  %v1593 = vmul.f32 %v1550, 1.442695
  %v1594 = vpow.pop %v1593
  %v1595 = vmul.f32 %v1551, 1.442695
  %v1596 = vpow.pop %v1595
  %v1597 = vmul.f32 %v1552, 1.442695
  %v1598 = vpow.pop %v1597
  %v1599 = vmul.f32 %v1553, 1.442695
  %v1600 = vpow.pop %v1599
  %v1601 = vmul.f32 %v1554, 1.442695
  %v1602 = vpow.pop %v1601
  %v1603 = vmul.f32 %v1555, 1.442695
  %v1604 = vpow.pop %v1603
  %v1605 = vmul.f32 %v1556, 1.442695
  %v1606 = vpow.pop %v1605
  %v1607 = vmul.f32 %v1557, 1.442695
  %v1608 = vpow.pop %v1607
  %v1609 = vmul.f32 %v1558, 1.442695
  %v1610 = vpow.pop %v1609
  %v1611 = vmul.f32 %v1559, 1.442695
  %v1612 = vpow.pop %v1611
  %v1613 = vmul.f32 %v1560, 1.442695
  %v1614 = vpow.pop %v1613
  %v1615 = vmul.f32 %v1561, 1.442695
  %v1616 = vpow.pop %v1615
  %v1617 = vmul.f32 %v1562, 1.442695
  %v1618 = vpow.pop %v1617
  %v1619 = vmul.f32 %v1563, 1.442695
  %v1620 = vpow.pop %v1619
  %v1621 = vmul.f32 %v1564, 1.442695
  %v1622 = vpow.pop %v1621
  %v1623 = vmul.f32 %v1565, 1.442695
  %v1624 = vpow.pop %v1623
  %v1625 = vmul.f32 %v1566, 1.442695
  %v1626 = vpow.pop %v1625
  %v1627 = vmul.f32 %v1567, 1.442695
  %v1628 = vpow.pop %v1627
  %v1629 = vmul.f32 %v1568, 1.442695
  %v1630 = vpow.pop %v1629
  %v1631 = vmul.f32 %v1569, 1.442695
  %v1632 = vpow.pop %v1631
  %v1633 = vmul.f32 %v1570, 1.442695
  %v1634 = vpow.pop %v1633
  %v1635 = vsel %vm1442, %v1572, 0.0
  %1636 = vadd.xlane.f32.xlu0 %v1635
  %v1637 = vpop.xlane.xlu0 %1636
  %v1638 = vsel %vm1442, %v1574, 0.0
  %1639 = vadd.xlane.f32.xlu0 %v1638
  %v1640 = vpop.xlane.xlu0 %1639
  %v1641 = vsel %vm1442, %v1576, 0.0
  %1642 = vadd.xlane.f32.xlu0 %v1641
  %v1643 = vpop.xlane.xlu0 %1642
  %v1644 = vsel %vm1442, %v1578, 0.0
  %1645 = vadd.xlane.f32.xlu0 %v1644
  %v1646 = vpop.xlane.xlu0 %1645
  %v1647 = vsel %vm1442, %v1580, 0.0
  %1648 = vadd.xlane.f32.xlu0 %v1647
  %v1649 = vpop.xlane.xlu0 %1648
  %v1650 = vsel %vm1442, %v1582, 0.0
  %1651 = vadd.xlane.f32.xlu0 %v1650
  %v1652 = vpop.xlane.xlu0 %1651
  %v1653 = vsel %vm1442, %v1584, 0.0
  %1654 = vadd.xlane.f32.xlu0 %v1653
  %v1655 = vpop.xlane.xlu0 %1654
  %v1656 = vsel %vm1442, %v1586, 0.0
  %1657 = vadd.xlane.f32.xlu0 %v1656
  %v1658 = vpop.xlane.xlu0 %1657
  %v1659 = vsel %vm1442, %v1588, 0.0
  %1660 = vadd.xlane.f32.xlu0 %v1659
  %v1661 = vpop.xlane.xlu0 %1660
  %v1662 = vsel %vm1442, %v1590, 0.0
  %1663 = vadd.xlane.f32.xlu0 %v1662
  %v1664 = vpop.xlane.xlu0 %1663
  %v1665 = vsel %vm1442, %v1592, 0.0
  %1666 = vadd.xlane.f32.xlu0 %v1665
  %v1667 = vpop.xlane.xlu0 %1666
  %v1668 = vsel %vm1442, %v1594, 0.0
  %1669 = vadd.xlane.f32.xlu0 %v1668
  %v1670 = vpop.xlane.xlu0 %1669
  %v1671 = vsel %vm1442, %v1596, 0.0
  %1672 = vadd.xlane.f32.xlu0 %v1671
  %v1673 = vpop.xlane.xlu0 %1672
  %v1674 = vsel %vm1442, %v1598, 0.0
  %1675 = vadd.xlane.f32.xlu0 %v1674
  %v1676 = vpop.xlane.xlu0 %1675
  %v1677 = vsel %vm1442, %v1600, 0.0
  %1678 = vadd.xlane.f32.xlu0 %v1677
  %v1679 = vpop.xlane.xlu0 %1678
  %v1680 = vsel %vm1442, %v1602, 0.0
  %1681 = vadd.xlane.f32.xlu0 %v1680
  %v1682 = vpop.xlane.xlu0 %1681
  %v1683 = vsel %vm1442, %v1604, 0.0
  %1684 = vadd.xlane.f32.xlu0 %v1683
  %v1685 = vpop.xlane.xlu0 %1684
  %v1686 = vsel %vm1442, %v1606, 0.0
  %1687 = vadd.xlane.f32.xlu0 %v1686
  %v1688 = vpop.xlane.xlu0 %1687
  %v1689 = vsel %vm1442, %v1608, 0.0
  %1690 = vadd.xlane.f32.xlu0 %v1689
  %v1691 = vpop.xlane.xlu0 %1690
  %v1692 = vsel %vm1442, %v1610, 0.0
  %1693 = vadd.xlane.f32.xlu0 %v1692
  %v1694 = vpop.xlane.xlu0 %1693
  %v1695 = vsel %vm1442, %v1612, 0.0
  %1696 = vadd.xlane.f32.xlu0 %v1695
  %v1697 = vpop.xlane.xlu0 %1696
  %v1698 = vsel %vm1442, %v1614, 0.0
  %1699 = vadd.xlane.f32.xlu0 %v1698
  %v1700 = vpop.xlane.xlu0 %1699
  %v1701 = vsel %vm1442, %v1616, 0.0
  %1702 = vadd.xlane.f32.xlu0 %v1701
  %v1703 = vpop.xlane.xlu0 %1702
  %v1704 = vsel %vm1442, %v1618, 0.0
  %1705 = vadd.xlane.f32.xlu0 %v1704
  %v1706 = vpop.xlane.xlu0 %1705
  %v1707 = vsel %vm1442, %v1620, 0.0
  %1708 = vadd.xlane.f32.xlu0 %v1707
  %v1709 = vpop.xlane.xlu0 %1708
  %v1710 = vsel %vm1442, %v1622, 0.0
  %1711 = vadd.xlane.f32.xlu0 %v1710
  %v1712 = vpop.xlane.xlu0 %1711
  %v1713 = vsel %vm1442, %v1624, 0.0
  %1714 = vadd.xlane.f32.xlu0 %v1713
  %v1715 = vpop.xlane.xlu0 %1714
  %v1716 = vsel %vm1442, %v1626, 0.0
  %1717 = vadd.xlane.f32.xlu0 %v1716
  %v1718 = vpop.xlane.xlu0 %1717
  %v1719 = vsel %vm1442, %v1628, 0.0
  %1720 = vadd.xlane.f32.xlu0 %v1719
  %v1721 = vpop.xlane.xlu0 %1720
  %v1722 = vsel %vm1442, %v1630, 0.0
  %1723 = vadd.xlane.f32.xlu0 %v1722
  %v1724 = vpop.xlane.xlu0 %1723
  %v1725 = vsel %vm1442, %v1632, 0.0
  %1726 = vadd.xlane.f32.xlu0 %v1725
  %v1727 = vpop.xlane.xlu0 %1726
  %v1728 = vsel %vm1442, %v1634, 0.0
  %1729 = vadd.xlane.f32.xlu0 %v1728
  %v1730 = vpop.xlane.xlu0 %1729
  %v1731 = vlog2.pop %v1637
  %v1732 = vmul.f32 %v1731, 0.6931472
  %v1733 = vlog2.pop %v1640
  %v1734 = vmul.f32 %v1733, 0.6931472
  %v1735 = vlog2.pop %v1643
  %v1736 = vmul.f32 %v1735, 0.6931472
  %v1737 = vlog2.pop %v1646
  %v1738 = vmul.f32 %v1737, 0.6931472
  %v1739 = vlog2.pop %v1649
  %v1740 = vmul.f32 %v1739, 0.6931472
  %v1741 = vlog2.pop %v1652
  %v1742 = vmul.f32 %v1741, 0.6931472
  %v1743 = vlog2.pop %v1655
  %v1744 = vmul.f32 %v1743, 0.6931472
  %v1745 = vlog2.pop %v1658
  %v1746 = vmul.f32 %v1745, 0.6931472
  %v1747 = vlog2.pop %v1661
  %v1748 = vmul.f32 %v1747, 0.6931472
  %v1749 = vlog2.pop %v1664
  %v1750 = vmul.f32 %v1749, 0.6931472
  %v1751 = vlog2.pop %v1667
  %v1752 = vmul.f32 %v1751, 0.6931472
  %v1753 = vlog2.pop %v1670
  %v1754 = vmul.f32 %v1753, 0.6931472
  %v1755 = vlog2.pop %v1673
  %v1756 = vmul.f32 %v1755, 0.6931472
  %v1757 = vlog2.pop %v1676
  %v1758 = vmul.f32 %v1757, 0.6931472
  %v1759 = vlog2.pop %v1679
  %v1760 = vmul.f32 %v1759, 0.6931472
  %v1761 = vlog2.pop %v1682
  %v1762 = vmul.f32 %v1761, 0.6931472
  %v1763 = vlog2.pop %v1685
  %v1764 = vmul.f32 %v1763, 0.6931472
  %v1765 = vlog2.pop %v1688
  %v1766 = vmul.f32 %v1765, 0.6931472
  %v1767 = vlog2.pop %v1691
  %v1768 = vmul.f32 %v1767, 0.6931472
  %v1769 = vlog2.pop %v1694
  %v1770 = vmul.f32 %v1769, 0.6931472
  %v1771 = vlog2.pop %v1697
  %v1772 = vmul.f32 %v1771, 0.6931472
  %v1773 = vlog2.pop %v1700
  %v1774 = vmul.f32 %v1773, 0.6931472
  %v1775 = vlog2.pop %v1703
  %v1776 = vmul.f32 %v1775, 0.6931472
  %v1777 = vlog2.pop %v1706
  %v1778 = vmul.f32 %v1777, 0.6931472
  %v1779 = vlog2.pop %v1709
  %v1780 = vmul.f32 %v1779, 0.6931472
  %v1781 = vlog2.pop %v1712
  %v1782 = vmul.f32 %v1781, 0.6931472
  %v1783 = vlog2.pop %v1715
  %v1784 = vmul.f32 %v1783, 0.6931472
  %v1785 = vlog2.pop %v1718
  %v1786 = vmul.f32 %v1785, 0.6931472
  %v1787 = vlog2.pop %v1721
  %v1788 = vmul.f32 %v1787, 0.6931472
  %v1789 = vlog2.pop %v1724
  %v1790 = vmul.f32 %v1789, 0.6931472
  %v1791 = vlog2.pop %v1727
  %v1792 = vmul.f32 %v1791, 0.6931472
  %v1793 = vlog2.pop %v1730
  %v1794 = vmul.f32 %v1793, 0.6931472
  %v1795 = vsub.f32 %v1539, %v1732
  %v1796 = vsub.f32 %v1540, %v1734
  %v1797 = vsub.f32 %v1541, %v1736
  %v1798 = vsub.f32 %v1542, %v1738
  %v1799 = vsub.f32 %v1543, %v1740
  %v1800 = vsub.f32 %v1544, %v1742
  %v1801 = vsub.f32 %v1545, %v1744
  %v1802 = vsub.f32 %v1546, %v1746
  %v1803 = vsub.f32 %v1547, %v1748
  %v1804 = vsub.f32 %v1548, %v1750
  %v1805 = vsub.f32 %v1549, %v1752
  %v1806 = vsub.f32 %v1550, %v1754
  %v1807 = vsub.f32 %v1551, %v1756
  %v1808 = vsub.f32 %v1552, %v1758
  %v1809 = vsub.f32 %v1553, %v1760
  %v1810 = vsub.f32 %v1554, %v1762
  %v1811 = vsub.f32 %v1555, %v1764
  %v1812 = vsub.f32 %v1556, %v1766
  %v1813 = vsub.f32 %v1557, %v1768
  %v1814 = vsub.f32 %v1558, %v1770
  %v1815 = vsub.f32 %v1559, %v1772
  %v1816 = vsub.f32 %v1560, %v1774
  %v1817 = vsub.f32 %v1561, %v1776
  %v1818 = vsub.f32 %v1562, %v1778
  %v1819 = vsub.f32 %v1563, %v1780
  %v1820 = vsub.f32 %v1564, %v1782
  %v1821 = vsub.f32 %v1565, %v1784
  %v1822 = vsub.f32 %v1566, %v1786
  %v1823 = vsub.f32 %v1567, %v1788
  %v1824 = vsub.f32 %v1568, %v1790
  %v1825 = vsub.f32 %v1569, %v1792
  %v1826 = vsub.f32 %v1570, %v1794
  %1827 = vst.msk [vmem:[%s6] sm:$0xff] %vm1442, %v1795
  %1828 = vst.msk [vmem:[%s6 + $0x8] sm:$0xff] %vm1442, %v1796
  %1829 = vst.msk [vmem:[%s6 + $0x10] sm:$0xff] %vm1442, %v1797
  %1830 = vst.msk [vmem:[%s6 + $0x18] sm:$0xff] %vm1442, %v1798
  %1831 = vst.msk [vmem:[%s6 + $0x20] sm:$0xff] %vm1442, %v1799
  %1832 = vst.msk [vmem:[%s6 + $0x28] sm:$0xff] %vm1442, %v1800
  %1833 = vst.msk [vmem:[%s6 + $0x30] sm:$0xff] %vm1442, %v1801
  %1834 = vst.msk [vmem:[%s6 + $0x38] sm:$0xff] %vm1442, %v1802
  %1835 = vst.msk [vmem:[%s6 + $0x40] sm:$0xff] %vm1442, %v1803
  %1836 = vst.msk [vmem:[%s6 + $0x48] sm:$0xff] %vm1442, %v1804
  %1837 = vst.msk [vmem:[%s6 + $0x50] sm:$0xff] %vm1442, %v1805
  %1838 = vst.msk [vmem:[%s6 + $0x58] sm:$0xff] %vm1442, %v1806
  %1839 = vst.msk [vmem:[%s6 + $0x60] sm:$0xff] %vm1442, %v1807
  %1840 = vst.msk [vmem:[%s6 + $0x68] sm:$0xff] %vm1442, %v1808
  %1841 = vst.msk [vmem:[%s6 + $0x70] sm:$0xff] %vm1442, %v1809
  %1842 = vst.msk [vmem:[%s6 + $0x78] sm:$0xff] %vm1442, %v1810
  %1843 = vst.msk [vmem:[%s6 + $0x80] sm:$0xff] %vm1442, %v1811
  %1844 = vst.msk [vmem:[%s6 + $0x88] sm:$0xff] %vm1442, %v1812
  %1845 = vst.msk [vmem:[%s6 + $0x90] sm:$0xff] %vm1442, %v1813
  %1846 = vst.msk [vmem:[%s6 + $0x98] sm:$0xff] %vm1442, %v1814
  %1847 = vst.msk [vmem:[%s6 + $0xa0] sm:$0xff] %vm1442, %v1815
  %1848 = vst.msk [vmem:[%s6 + $0xa8] sm:$0xff] %vm1442, %v1816
  %1849 = vst.msk [vmem:[%s6 + $0xb0] sm:$0xff] %vm1442, %v1817
  %1850 = vst.msk [vmem:[%s6 + $0xb8] sm:$0xff] %vm1442, %v1818
  %1851 = vst.msk [vmem:[%s6 + $0xc0] sm:$0xff] %vm1442, %v1819
  %1852 = vst.msk [vmem:[%s6 + $0xc8] sm:$0xff] %vm1442, %v1820
  %1853 = vst.msk [vmem:[%s6 + $0xd0] sm:$0xff] %vm1442, %v1821
  %1854 = vst.msk [vmem:[%s6 + $0xd8] sm:$0xff] %vm1442, %v1822
  %1855 = vst.msk [vmem:[%s6 + $0xe0] sm:$0xff] %vm1442, %v1823
  %1856 = vst.msk [vmem:[%s6 + $0xe8] sm:$0xff] %vm1442, %v1824
  %1857 = vst.msk [vmem:[%s6 + $0xf0] sm:$0xff] %vm1442, %v1825
  %1858 = vst.msk [vmem:[%s6 + $0xf8] sm:$0xff] %vm1442, %v1826
  // Predicated region
  $region56: #{tpu_custom_call.1} parent=0 // pred_check
    _
  $region57: #{tpu_custom_call.1} parent=0 // pred_check_branch
    %1860 = sbr.rel (0) target = $region59
  $region58: #{tpu_custom_call.1} parent=0 // pred_region
    _
  $region59: #{tpu_custom_call.1} parent=0 // pred_fallthru
    _
  // Predicated region
  $region60: #{tpu_custom_call.1} parent=0 // pred_check
    _
  $region61: #{tpu_custom_call.1} parent=0 // pred_check_branch
    %1862 = sbr.rel (0) target = $region63
  $region62: #{tpu_custom_call.1} parent=0 // pred_region
    _
  $region63: #{tpu_custom_call.1} parent=0 // pred_fallthru
    _
  %1863 = vsyncmov [#allocation3]
  %s1864 = vpop.sfrf %1863
  %p1865 = scmp.eq.s32.totalorder %s1864, 0
  %p1866 = pneg %p1865
  %1868 = shalt.err (%p1866)

</llo_original>
